<compile_context>
chip_gen: v5e
topology: v5e:2x2
jax: 0.10.0
libtpu: 0.0.40
codegen_flags: <defaults>
</compile_context>

<pallas_src>
import numpy as np
import jax
import jax.numpy as jnp
from jax.experimental import pallas as pl
from jax.experimental.pallas import tpu as pltpu


# ----------------------------------------------------------------------------
# Filter design (scipy-free re-implementation of scipy.signal.firwin lowpass
# with a Kaiser window, as used by LReLu.design_lowpass_filter, radial=False).
# ----------------------------------------------------------------------------
def _kaiser_atten(numtaps, width):
    return 2.285 * (numtaps - 1) * np.pi * width + 7.95


def _kaiser_beta(a):
    if a > 50:
        return 0.1102 * (a - 8.7)
    elif a > 21:
        return 0.5842 * (a - 21) ** 0.4 + 0.07886 * (a - 21)
    return 0.0


def design_lowpass_filter(numtaps, cutoff, width, fs):
    assert numtaps >= 1
    if numtaps == 1:
        return None  # identity filter (handled downstream)
    nyq = 0.5 * fs
    cut = cutoff / nyq
    beta = _kaiser_beta(_kaiser_atten(numtaps, width / nyq))
    alpha = 0.5 * (numtaps - 1)
    m = np.arange(numtaps) - alpha
    h = cut * np.sinc(cut * m)
    h = h * np.kaiser(numtaps, beta)
    h = h / np.sum(h)
    return h.astype(np.float32)


# ----------------------------------------------------------------------------
# Host-side Toeplitz construction (vectorized)
# ----------------------------------------------------------------------------
def _up_matrix(n_in, up, p0, p1, fu_flip_scaled):
    """(n_t, n_in): zero-insert upsample by `up`, pad (p0, p1), conv fu."""
    f = np.asarray(fu_flip_scaled, np.float64)
    Tu = len(f)
    n_p = n_in * up + p0 + p1
    n_t = n_p - Tu + 1
    assert n_t > 0, "invalid padding / filter configuration"
    M = np.zeros((n_t, n_in), np.float64)
    j = np.arange(n_t)[:, None]
    w = np.arange(n_in)[None, :]
    t = p0 + w * up - j                       # unique tap index per (j, w)
    valid = (t >= 0) & (t < Tu)
    M[valid] = f[t[valid]]
    return M


def _down_matrix(n_t, down, fd_flip):
    """(n_out, n_t): conv fd then keep every `down`-th sample (offset 0)."""
    f = np.asarray(fd_flip, np.float64)
    Td = len(f)
    n_d = n_t - Td + 1
    assert n_d > 0, "invalid filter configuration"
    n_out = (n_d + down - 1) // down
    M = np.zeros((n_out, n_t), np.float64)
    jo = np.arange(n_out)[:, None]
    t = np.arange(Td)[None, :]
    M[jo, jo * down + t] = np.broadcast_to(f, (n_out, Td))
    return M


# ----------------------------------------------------------------------------
# VMEM budgeting helpers
# ----------------------------------------------------------------------------
def _round_up(x, m):
    return (x + m - 1) // m * m


def _pad2_bytes(r, c):
    """f32 VMEM footprint of an (r, c) buffer after (8, 128) tile padding."""
    return _round_up(max(int(r), 1), 8) * _round_up(max(int(c), 1), 128) * 4


def _vmem_capacity_bytes():
    try:
        return int(pltpu.get_tpu_info().vmem_capacity_bytes)
    except Exception:
        return 64 << 20  # conservative: v7x per-TensorCore VMEM


def _pick_cb(nc, aligned_fn, ws_fn, budget_bytes, max_cb=16):
    """Planes per grid step: divisor of nc, sublane-aligned blocks, fits VMEM budget."""
    divisors = [d for d in range(1, nc + 1) if nc % d == 0]
    aligned = [d for d in divisors if aligned_fn(d)]
    if not aligned:
        return nc  # whole-array block (block dims == array dims are always legal)
    fitting = [d for d in aligned if d <= max_cb and ws_fn(d) <= budget_bytes]
    if not fitting:
        # even the smallest aligned divisor exceeds the budget
        # TODO(synk): halo'd H-row tiling removes this failure mode for huge planes
        return aligned[0]
    cb = max(fitting)
    # keep >= 2 grid steps so pipelining / v7x megacore sharding can engage
    while nc // cb < 2 and len(fitting) > 1:
        fitting.remove(cb)
        cb = max(fitting)
    return cb


# ----------------------------------------------------------------------------
# Pallas kernel: Toeplitz FIR matmuls (3-pass split-precision) + leaky ReLU.
# ----------------------------------------------------------------------------
def _make_kernel(cb, h, hout, slope):
    def _split(v):
        hi = v.astype(jnp.bfloat16).astype(jnp.float32)
        return hi, v - hi

    def _dot3(a, b):
        # ~bf16_3x (Precision.HIGH-equivalent) built from three single-pass MXU dots;
        # Mosaic's dot lowering only accepts DEFAULT / HIGHEST (HIGHEST ~= 6 passes).
        a_hi, a_lo = a if isinstance(a, tuple) else _split(a)
        b_hi, b_lo = b if isinstance(b, tuple) else _split(b)
        kw = dict(preferred_element_type=jnp.float32)
        return (jnp.dot(a_hi, b_hi, **kw)
                + jnp.dot(a_lo, b_hi, **kw)
                + jnp.dot(a_hi, b_lo, **kw))

    def kernel(x_ref, b_ref, awt_ref, ah_ref, bh_ref, bwt_ref, o_ref, mid_ref):
        x = x_ref[...] + b_ref[...]                     # (CB*H, W): bias in-kernel
        y = _dot3(x, awt_ref[...])                      # up-FIR along W -> (CB*H, Wt_p)
        ah = _split(ah_ref[...])                        # (Ht, H), split once
        bh = _split(bh_ref[...])                        # (Hout, Ht)
        for c in range(cb):                             # per-plane H passes (no kron)
            z = _dot3(ah, y[c * h:(c + 1) * h, :])      # up-FIR along H -> (Ht, Wt_p)
            z = jnp.where(z >= 0.0, z, z * slope)       # leaky ReLU (gain folded into BwT)
            mid_ref[c * hout:(c + 1) * hout, :] = _dot3(bh, z)  # down-FIR+decimate along H
        # down-FIR + decimate along W (+ gain), one fat lane-dense matmul + store
        o_ref[...] = _dot3(mid_ref[...], bwt_ref[...]).astype(o_ref.dtype)

    return kernel


def filtered_lrelu_pallas(x, bias, fu, fd, up, down, padding,
                          gain=float(np.sqrt(2)), slope=0.2):
    assert x.dtype == jnp.float32
    N, C, H, W = x.shape
    # bias has out_channels entries; this path requires in_channels == out_channels
    assert bias.shape[0] == C, "bias length must match the channel axis of x"
    px0, px1, py0, py1 = [int(p) for p in padding]

    fu = np.ones(1, np.float64) if fu is None else np.asarray(fu, np.float64)
    fd = np.ones(1, np.float64) if fd is None else np.asarray(fd, np.float64)

    # upfirdn2d separable passes: flipped taps, gain=up**2 split as `up` per pass.
    fu_flip = fu[::-1] * float(up)
    fd_flip = fd[::-1]

    Aw = _up_matrix(W, up, px0, px1, fu_flip)          # (Wt, W)
    Ah = _up_matrix(H, up, py0, py1, fu_flip)          # (Ht, H)
    Bw = _down_matrix(Aw.shape[0], down, fd_flip)      # (Wout, Wt)
    Bh = _down_matrix(Ah.shape[0], down, fd_flip)      # (Hout, Ht)
    Wt, Ht = Aw.shape[0], Ah.shape[0]
    Wout, Hout = Bw.shape[0], Bh.shape[0]

    # Lane padding: zero taps in padded Wt columns stay zero through lrelu and the
    # (linear, per-column) H passes, and the padded BwT rows contribute nothing.
    Wt_p = _round_up(Wt, 128)
    Wout_p = _round_up(Wout, 128) if Wout >= 64 else Wout

    NC = N * C
    phys_vmem = _vmem_capacity_bytes()
    budget = phys_vmem // 2

    def aligned_fn(cb):
        return (cb * H) % 8 == 0 and (cb * Hout) % 8 == 0

    def ws_fn(cb):
        x_blk = 2 * _pad2_bytes(cb * H, W)                       # double-buffered input
        b_blk = 2 * _pad2_bytes(cb * H, 1)                       # per-row bias column
        o_blk = 2 * _pad2_bytes(cb * Hout, Wout_p)               # double-buffered output
        consts = 2 * (_pad2_bytes(W, Wt_p) + _pad2_bytes(Ht, H)
                      + _pad2_bytes(Hout, Ht) + _pad2_bytes(Wt_p, Wout_p))
        scratch = _pad2_bytes(cb * Hout, Wt_p)
        live = (3 * _pad2_bytes(cb * H, Wt_p)      # y + hi/lo split
                + 3 * _pad2_bytes(Ht, Wt_p)        # z + splits
                + 3 * _pad2_bytes(cb * H, W)       # x+b + hi/lo
                + 3 * _pad2_bytes(cb * Hout, Wt_p))  # mid value + split for last dot
        return x_blk + b_blk + o_blk + consts + scratch + live

    CB = _pick_cb(NC, aligned_fn, ws_fn, budget)
    G = NC // CB
    ws = ws_fn(CB)
    vmem_limit = int(min(max(32 << 20, 2 * ws), max(phys_vmem - (8 << 20), 32 << 20)))

    # Host-built operands (constants w.r.t. x), zero-padded to lane-dense widths.
    awt_np = np.zeros((W, Wt_p), np.float32)
    awt_np[:, :Wt] = Aw.T
    bwt_np = np.zeros((Wt_p, Wout_p), np.float32)
    bwt_np[:Wt, :Wout] = (Bw * float(gain)).T
    awt = jnp.asarray(awt_np)                          # (W, Wt_p)
    bwt = jnp.asarray(bwt_np)                          # (Wt_p, Wout_p)
    ah = jnp.asarray(Ah, jnp.float32)                  # (Ht, H)
    bh = jnp.asarray(Bh, jnp.float32)                  # (Hout, Ht)

    # Layout plumbing: row-stacked planes (free reshape), per-row bias column.
    x2 = x.reshape(NC * H, W)
    bias_rows = jnp.repeat(jnp.tile(bias.astype(jnp.float32), N), H).reshape(NC * H, 1)

    kernel = _make_kernel(CB, H, Hout, float(slope))
    out2 = pl.pallas_call(
        kernel,
        out_shape=jax.ShapeDtypeStruct((NC * Hout, Wout_p), jnp.float32),
        grid=(G,),
        in_specs=[
            pl.BlockSpec((CB * H, W), lambda i: (i, 0)),        # x block
            pl.BlockSpec((CB * H, 1), lambda i: (i, 0)),        # per-row bias
            pl.BlockSpec((W, Wt_p), lambda i: (0, 0)),          # Aw^T (resident, padded)
            pl.BlockSpec((Ht, H), lambda i: (0, 0)),            # Ah (per-plane H up-pass)
            pl.BlockSpec((Hout, Ht), lambda i: (0, 0)),         # Bh (per-plane H down-pass)
            pl.BlockSpec((Wt_p, Wout_p), lambda i: (0, 0)),     # (gain*Bw)^T (padded)
        ],
        out_specs=pl.BlockSpec((CB * Hout, Wout_p), lambda i: (i, 0)),
        scratch_shapes=[pltpu.VMEM((CB * Hout, Wt_p), jnp.float32)],
        compiler_params=pltpu.CompilerParams(
            dimension_semantics=("parallel",),
            vmem_limit_bytes=vmem_limit,
        ),
    )(x2, bias_rows, awt, ah, bh, bwt)

    if Wout_p != Wout:
        out2 = out2[:, :Wout]
    return out2.reshape(N, C, Hout, Wout)


# ----------------------------------------------------------------------------
# Module wrapper mirroring LReLu.__init__ arithmetic (deterministic params).
# ----------------------------------------------------------------------------
class LReLuPallas:
    def __init__(self, in_channels, out_channels, in_size, out_size,
                 in_sampling_rate, out_sampling_rate, in_cutoff, out_cutoff,
                 in_half_width, out_half_width, filter_size=6, lrelu_upsampling=2,
                 is_critically_sampled=False, use_radial_filters=False):
        self.in_channels = in_channels
        self.out_channels = out_channels
        self.in_size = np.asarray(in_size)
        self.out_size = np.asarray(out_size)
        tmp = (max(in_sampling_rate[0], out_sampling_rate[0]) * lrelu_upsampling,
               max(in_sampling_rate[1], out_sampling_rate[1]) * lrelu_upsampling)

        # bias parameter: initialized to zeros as in the module's __init__
        self.bias = jnp.zeros((out_channels,), jnp.float32)

        self.up_factor = (int(np.rint(tmp[0] / in_sampling_rate[0])),
                          int(np.rint(tmp[1] / in_sampling_rate[1])))
        self.up_taps = (filter_size * (self.up_factor[0] if self.up_factor[0] > 1 else 1),
                        filter_size * (self.up_factor[1] if self.up_factor[1] > 1 else 1))
        self.up_filter_0 = design_lowpass_filter(
            numtaps=self.up_taps[0], cutoff=in_cutoff[0],
            width=in_half_width[0] * 2, fs=tmp[0])

        self.down_factor = (int(np.rint(tmp[0] / out_sampling_rate[0])),
                            int(np.rint(tmp[1] / out_sampling_rate[1])))
        # (keep the module's original operator-precedence quirk on element 1)
        self.down_taps = (filter_size * (self.down_factor[0] if self.down_factor[0] > 1 else 1),
                          filter_size * self.down_factor[1] if self.down_factor[1] > 1 else 1)
        # TODO(synk): radial (jinc) down-filters (scipy.special.j1) not implemented;
        #             only the default separable path is supported.
        self.down_filter_0 = design_lowpass_filter(
            numtaps=self.down_taps[0], cutoff=out_cutoff[0],
            width=out_half_width[0] * 2, fs=tmp[0])

        pad_total = ((self.out_size[0] - 1) * self.down_factor[0] + 1,
                     (self.out_size[1] - 1) * self.down_factor[1] + 1)
        pad_total = (pad_total[0] - self.in_size[0] * self.up_factor[0],
                     pad_total[1] - self.in_size[1] * self.up_factor[1])
        pad_total = (pad_total[0] + self.up_taps[0] + self.down_taps[0] - 2,
                     pad_total[1] + self.up_taps[1] + self.down_taps[1] - 2)
        pad_lo = ((pad_total[0] + self.up_factor[0]) // 2,
                  (pad_total[1] + self.up_factor[1]) // 2)
        pad_hi = (pad_total[0] - pad_lo[0], pad_total[1] - pad_lo[1])
        self.padding = [int(pad_lo[0]), int(pad_hi[0]), int(pad_lo[1]), int(pad_hi[1])]

    def __call__(self, x):
        assert x.shape[1] == self.out_channels  # bias broadcast requires in==out channels
        y = filtered_lrelu_pallas(
            x, self.bias, self.up_filter_0, self.down_filter_0,
            up=self.up_factor[0], down=self.down_factor[0],
            padding=self.padding, gain=float(np.sqrt(2)), slope=0.2)
        assert y.shape[1] == self.out_channels
        assert y.dtype == jnp.float32
        return y


# ----------------------------------------------------------------------------
# Pure-numpy reference (same math as the PyTorch reference path) for checking.
# ----------------------------------------------------------------------------
def _ref_filtered_lrelu(x, b, fu, fd, up, down, padding, gain, slope):
    fu = np.ones(1) if fu is None else np.asarray(fu)
    fd = np.ones(1) if fd is None else np.asarray(fd)
    x = np.asarray(x, np.float64) + np.asarray(b, np.float64)[None, :, None, None]
    N, C, H, W = x.shape
    xu = np.zeros((N, C, H * up, W * up), np.float64)
    xu[:, :, ::up, ::up] = x
    px0, px1, py0, py1 = padding
    xp = np.pad(xu, ((0, 0), (0, 0), (py0, py1), (px0, px1)))
    fu_s = np.asarray(fu, np.float64)[::-1] * up
    fd_s = np.asarray(fd, np.float64)[::-1]

    def conv_w(a, f):
        T = len(f); Wo = a.shape[-1] - T + 1
        out = np.zeros(a.shape[:-1] + (Wo,), np.float64)
        for t in range(T):
            out += f[t] * a[..., t:t + Wo]
        return out

    def conv_h(a, f):
        T = len(f); Ho = a.shape[-2] - T + 1
        out = np.zeros(a.shape[:-2] + (Ho, a.shape[-1]), np.float64)
        for t in range(T):
            out += f[t] * a[..., t:t + Ho, :]
        return out

    y = conv_h(conv_w(xp, fu_s), fu_s)
    y = np.where(y >= 0, y, slope * y) * gain
    y = conv_h(conv_w(y, fd_s), fd_s)
    return y[:, :, ::down, ::down].astype(np.float32)


if __name__ == "__main__":
    key = jax.random.PRNGKey(0)
    N, C = 2, 4
    in_size, out_size = (16, 16), (16, 16)
    in_rate, out_rate = (16, 16), (16, 16)
    in_cutoff, out_cutoff = (6.0, 6.0), (6.0, 6.0)
    in_hw, out_hw = (2.0, 2.0), (2.0, 2.0)

    mod = LReLuPallas(C, C, in_size, out_size, in_rate, out_rate,
                      in_cutoff, out_cutoff, in_hw, out_hw)

    kx, kb = jax.random.split(key)
    x = jax.random.normal(kx, (N, C, in_size[1], in_size[0]), jnp.float32)
    # exercise the in-kernel bias path with a non-trivial bias
    mod.bias = 0.1 * jax.random.normal(kb, (C,), jnp.float32)

    y = mod(x)
    y = jax.block_until_ready(y)

    y_ref = _ref_filtered_lrelu(np.asarray(x), np.asarray(mod.bias),
                                mod.up_filter_0, mod.down_filter_0,
                                mod.up_factor[0], mod.down_factor[0],
                                mod.padding, float(np.sqrt(2)), 0.2)

    assert y.shape == (N, C, out_size[1], out_size[0]), y.shape
    assert y.dtype == jnp.float32
    np.testing.assert_allclose(np.asarray(y), y_ref, rtol=5e-4, atol=5e-4)
    print("KERNEL_OK")
</pallas_src>

<mosaic_0001>
module attributes {stable_mosaic.version = 11 : i64} {
  func.func @kernel(%arg0: i32, %arg1: memref<64x16xf32, #tpu.memory_space<vmem>>, %arg2: memref<64x1xf32, #tpu.memory_space<vmem>>, %arg3: memref<16x128xf32, #tpu.memory_space<vmem>>, %arg4: memref<42x16xf32, #tpu.memory_space<vmem>>, %arg5: memref<16x42xf32, #tpu.memory_space<vmem>>, %arg6: memref<128x16xf32, #tpu.memory_space<vmem>>, %arg7: memref<64x16xf32, #tpu.memory_space<vmem>>, %arg8: memref<64x128xf32, #tpu.memory_space<vmem>>) attributes {dimension_semantics = [#tpu.dimension_semantics<parallel>], iteration_bounds = array<i64: 2>, scalar_prefetch = 0 : i64, scratch_operands = 1 : i64, tpu.core_type = #tpu.core_type<tc>, window_params = [{transform_indices = @transform_0, window_bounds = array<i64: 64, 16>}, {transform_indices = @transform_1, window_bounds = array<i64: 64, 1>}, {pipeline_mode = #tpu.pipeline_mode<synchronous>, transform_indices = @transform_2, window_bounds = array<i64: 16, 128>}, {pipeline_mode = #tpu.pipeline_mode<synchronous>, transform_indices = @transform_3, window_bounds = array<i64: 42, 16>}, {pipeline_mode = #tpu.pipeline_mode<synchronous>, transform_indices = @transform_4, window_bounds = array<i64: 16, 42>}, {pipeline_mode = #tpu.pipeline_mode<synchronous>, transform_indices = @transform_5, window_bounds = array<i64: 128, 16>}, {transform_indices = @transform_6, window_bounds = array<i64: 64, 16>}]} {
    %c0 = arith.constant 0 : index
    %c0_0 = arith.constant 0 : index
    %0 = vector.load %arg1[%c0, %c0_0] : memref<64x16xf32, #tpu.memory_space<vmem>>, vector<64x16xf32>
    %c0_1 = arith.constant 0 : index
    %c0_2 = arith.constant 0 : index
    %1 = vector.load %arg2[%c0_1, %c0_2] : memref<64x1xf32, #tpu.memory_space<vmem>>, vector<64x1xf32>
    %2 = vector.broadcast %1 : vector<64x1xf32> to vector<64x16xf32>
    %3 = arith.addf %0, %2 : vector<64x16xf32>
    %c0_3 = arith.constant 0 : index
    %c0_4 = arith.constant 0 : index
    %4 = vector.load %arg3[%c0_3, %c0_4] : memref<16x128xf32, #tpu.memory_space<vmem>>, vector<16x128xf32>
    %5 = arith.truncf %3 : vector<64x16xf32> to vector<64x16xbf16>
    %6 = arith.extf %5 : vector<64x16xbf16> to vector<64x16xf32>
    %7 = arith.subf %3, %6 : vector<64x16xf32>
    %8 = arith.truncf %4 : vector<16x128xf32> to vector<16x128xbf16>
    %9 = arith.extf %8 : vector<16x128xbf16> to vector<16x128xf32>
    %10 = arith.subf %4, %9 : vector<16x128xf32>
    %cst = arith.constant dense<0.000000e+00> : vector<64x128xf32>
    %11 = tpu.matmul %6, %9, %cst {dimension_numbers = #tpu.dot_dimension_numbers<[1], [0], [0], [1], [0, 0, 1, 1], [], []>} : vector<64x16xf32>, vector<16x128xf32>, vector<64x128xf32> -> vector<64x128xf32>
    %cst_5 = arith.constant dense<0.000000e+00> : vector<64x128xf32>
    %12 = tpu.matmul %7, %9, %cst_5 {dimension_numbers = #tpu.dot_dimension_numbers<[1], [0], [0], [1], [0, 0, 1, 1], [], []>} : vector<64x16xf32>, vector<16x128xf32>, vector<64x128xf32> -> vector<64x128xf32>
    %13 = arith.addf %11, %12 : vector<64x128xf32>
    %cst_6 = arith.constant dense<0.000000e+00> : vector<64x128xf32>
    %14 = tpu.matmul %6, %10, %cst_6 {dimension_numbers = #tpu.dot_dimension_numbers<[1], [0], [0], [1], [0, 0, 1, 1], [], []>} : vector<64x16xf32>, vector<16x128xf32>, vector<64x128xf32> -> vector<64x128xf32>
    %15 = arith.addf %13, %14 : vector<64x128xf32>
    %c0_7 = arith.constant 0 : index
    %c0_8 = arith.constant 0 : index
    %16 = vector.load %arg4[%c0_7, %c0_8] : memref<42x16xf32, #tpu.memory_space<vmem>>, vector<42x16xf32>
    %17 = arith.truncf %16 : vector<42x16xf32> to vector<42x16xbf16>
    %18 = arith.extf %17 : vector<42x16xbf16> to vector<42x16xf32>
    %19 = arith.subf %16, %18 : vector<42x16xf32>
    %c0_9 = arith.constant 0 : index
    %c0_10 = arith.constant 0 : index
    %20 = vector.load %arg5[%c0_9, %c0_10] : memref<16x42xf32, #tpu.memory_space<vmem>>, vector<16x42xf32>
    %21 = arith.truncf %20 : vector<16x42xf32> to vector<16x42xbf16>
    %22 = arith.extf %21 : vector<16x42xbf16> to vector<16x42xf32>
    %23 = arith.subf %20, %22 : vector<16x42xf32>
    %24 = vector.extract_strided_slice %15 {offsets = [0, 0], sizes = [16, 128], strides = [1, 1]} : vector<64x128xf32> to vector<16x128xf32>
    %25 = arith.truncf %24 : vector<16x128xf32> to vector<16x128xbf16>
    %26 = arith.extf %25 : vector<16x128xbf16> to vector<16x128xf32>
    %27 = arith.subf %24, %26 : vector<16x128xf32>
    %cst_11 = arith.constant dense<0.000000e+00> : vector<42x128xf32>
    %28 = tpu.matmul %18, %26, %cst_11 {dimension_numbers = #tpu.dot_dimension_numbers<[1], [0], [0], [1], [0, 0, 1, 1], [], []>} : vector<42x16xf32>, vector<16x128xf32>, vector<42x128xf32> -> vector<42x128xf32>
    %cst_12 = arith.constant dense<0.000000e+00> : vector<42x128xf32>
    %29 = tpu.matmul %19, %26, %cst_12 {dimension_numbers = #tpu.dot_dimension_numbers<[1], [0], [0], [1], [0, 0, 1, 1], [], []>} : vector<42x16xf32>, vector<16x128xf32>, vector<42x128xf32> -> vector<42x128xf32>
    %30 = arith.addf %28, %29 : vector<42x128xf32>
    %cst_13 = arith.constant dense<0.000000e+00> : vector<42x128xf32>
    %31 = tpu.matmul %18, %27, %cst_13 {dimension_numbers = #tpu.dot_dimension_numbers<[1], [0], [0], [1], [0, 0, 1, 1], [], []>} : vector<42x16xf32>, vector<16x128xf32>, vector<42x128xf32> -> vector<42x128xf32>
    %32 = arith.addf %30, %31 : vector<42x128xf32>
    %cst_14 = arith.constant 0.000000e+00 : f32
    %33 = vector.broadcast %cst_14 : f32 to vector<42x128xf32>
    %34 = arith.cmpf oge, %32, %33 : vector<42x128xf32>
    %cst_15 = arith.constant 2.000000e-01 : f32
    %35 = vector.broadcast %cst_15 : f32 to vector<42x128xf32>
    %36 = arith.mulf %32, %35 : vector<42x128xf32>
    %37 = arith.select %34, %32, %36 : vector<42x128xi1>, vector<42x128xf32>
    %38 = arith.truncf %37 : vector<42x128xf32> to vector<42x128xbf16>
    %39 = arith.extf %38 : vector<42x128xbf16> to vector<42x128xf32>
    %40 = arith.subf %37, %39 : vector<42x128xf32>
    %cst_16 = arith.constant dense<0.000000e+00> : vector<16x128xf32>
    %41 = tpu.matmul %22, %39, %cst_16 {dimension_numbers = #tpu.dot_dimension_numbers<[1], [0], [0], [1], [0, 0, 1, 1], [], []>} : vector<16x42xf32>, vector<42x128xf32>, vector<16x128xf32> -> vector<16x128xf32>
    %cst_17 = arith.constant dense<0.000000e+00> : vector<16x128xf32>
    %42 = tpu.matmul %23, %39, %cst_17 {dimension_numbers = #tpu.dot_dimension_numbers<[1], [0], [0], [1], [0, 0, 1, 1], [], []>} : vector<16x42xf32>, vector<42x128xf32>, vector<16x128xf32> -> vector<16x128xf32>
    %43 = arith.addf %41, %42 : vector<16x128xf32>
    %cst_18 = arith.constant dense<0.000000e+00> : vector<16x128xf32>
    %44 = tpu.matmul %22, %40, %cst_18 {dimension_numbers = #tpu.dot_dimension_numbers<[1], [0], [0], [1], [0, 0, 1, 1], [], []>} : vector<16x42xf32>, vector<42x128xf32>, vector<16x128xf32> -> vector<16x128xf32>
    %45 = arith.addf %43, %44 : vector<16x128xf32>
    %c0_19 = arith.constant 0 : index
    %c0_20 = arith.constant 0 : index
    %46 = vector.load %arg8[%c0_19, %c0_20] : memref<64x128xf32, #tpu.memory_space<vmem>>, vector<16x128xf32>
    tpu.vector_store %arg8[%c0_19, %c0_20], %45 {strides = array<i32>} : memref<64x128xf32, #tpu.memory_space<vmem>>, vector<16x128xf32>,
    %47 = vector.extract_strided_slice %15 {offsets = [16, 0], sizes = [16, 128], strides = [1, 1]} : vector<64x128xf32> to vector<16x128xf32>
    %48 = arith.truncf %47 : vector<16x128xf32> to vector<16x128xbf16>
    %49 = arith.extf %48 : vector<16x128xbf16> to vector<16x128xf32>
    %50 = arith.subf %47, %49 : vector<16x128xf32>
    %cst_21 = arith.constant dense<0.000000e+00> : vector<42x128xf32>
    %51 = tpu.matmul %18, %49, %cst_21 {dimension_numbers = #tpu.dot_dimension_numbers<[1], [0], [0], [1], [0, 0, 1, 1], [], []>} : vector<42x16xf32>, vector<16x128xf32>, vector<42x128xf32> -> vector<42x128xf32>
    %cst_22 = arith.constant dense<0.000000e+00> : vector<42x128xf32>
    %52 = tpu.matmul %19, %49, %cst_22 {dimension_numbers = #tpu.dot_dimension_numbers<[1], [0], [0], [1], [0, 0, 1, 1], [], []>} : vector<42x16xf32>, vector<16x128xf32>, vector<42x128xf32> -> vector<42x128xf32>
    %53 = arith.addf %51, %52 : vector<42x128xf32>
    %cst_23 = arith.constant dense<0.000000e+00> : vector<42x128xf32>
    %54 = tpu.matmul %18, %50, %cst_23 {dimension_numbers = #tpu.dot_dimension_numbers<[1], [0], [0], [1], [0, 0, 1, 1], [], []>} : vector<42x16xf32>, vector<16x128xf32>, vector<42x128xf32> -> vector<42x128xf32>
    %55 = arith.addf %53, %54 : vector<42x128xf32>
    %cst_24 = arith.constant 0.000000e+00 : f32
    %56 = vector.broadcast %cst_24 : f32 to vector<42x128xf32>
    %57 = arith.cmpf oge, %55, %56 : vector<42x128xf32>
    %cst_25 = arith.constant 2.000000e-01 : f32
    %58 = vector.broadcast %cst_25 : f32 to vector<42x128xf32>
    %59 = arith.mulf %55, %58 : vector<42x128xf32>
    %60 = arith.select %57, %55, %59 : vector<42x128xi1>, vector<42x128xf32>
    %61 = arith.truncf %60 : vector<42x128xf32> to vector<42x128xbf16>
    %62 = arith.extf %61 : vector<42x128xbf16> to vector<42x128xf32>
    %63 = arith.subf %60, %62 : vector<42x128xf32>
    %cst_26 = arith.constant dense<0.000000e+00> : vector<16x128xf32>
    %64 = tpu.matmul %22, %62, %cst_26 {dimension_numbers = #tpu.dot_dimension_numbers<[1], [0], [0], [1], [0, 0, 1, 1], [], []>} : vector<16x42xf32>, vector<42x128xf32>, vector<16x128xf32> -> vector<16x128xf32>
    %cst_27 = arith.constant dense<0.000000e+00> : vector<16x128xf32>
    %65 = tpu.matmul %23, %62, %cst_27 {dimension_numbers = #tpu.dot_dimension_numbers<[1], [0], [0], [1], [0, 0, 1, 1], [], []>} : vector<16x42xf32>, vector<42x128xf32>, vector<16x128xf32> -> vector<16x128xf32>
    %66 = arith.addf %64, %65 : vector<16x128xf32>
    %cst_28 = arith.constant dense<0.000000e+00> : vector<16x128xf32>
    %67 = tpu.matmul %22, %63, %cst_28 {dimension_numbers = #tpu.dot_dimension_numbers<[1], [0], [0], [1], [0, 0, 1, 1], [], []>} : vector<16x42xf32>, vector<42x128xf32>, vector<16x128xf32> -> vector<16x128xf32>
    %68 = arith.addf %66, %67 : vector<16x128xf32>
    %c16 = arith.constant 16 : index
    %c0_29 = arith.constant 0 : index
    %69 = vector.load %arg8[%c16, %c0_29] : memref<64x128xf32, #tpu.memory_space<vmem>>, vector<16x128xf32>
    tpu.vector_store %arg8[%c16, %c0_29], %68 {strides = array<i32>} : memref<64x128xf32, #tpu.memory_space<vmem>>, vector<16x128xf32>,
    %70 = vector.extract_strided_slice %15 {offsets = [32, 0], sizes = [16, 128], strides = [1, 1]} : vector<64x128xf32> to vector<16x128xf32>
    %71 = arith.truncf %70 : vector<16x128xf32> to vector<16x128xbf16>
    %72 = arith.extf %71 : vector<16x128xbf16> to vector<16x128xf32>
    %73 = arith.subf %70, %72 : vector<16x128xf32>
    %cst_30 = arith.constant dense<0.000000e+00> : vector<42x128xf32>
    %74 = tpu.matmul %18, %72, %cst_30 {dimension_numbers = #tpu.dot_dimension_numbers<[1], [0], [0], [1], [0, 0, 1, 1], [], []>} : vector<42x16xf32>, vector<16x128xf32>, vector<42x128xf32> -> vector<42x128xf32>
    %cst_31 = arith.constant dense<0.000000e+00> : vector<42x128xf32>
    %75 = tpu.matmul %19, %72, %cst_31 {dimension_numbers = #tpu.dot_dimension_numbers<[1], [0], [0], [1], [0, 0, 1, 1], [], []>} : vector<42x16xf32>, vector<16x128xf32>, vector<42x128xf32> -> vector<42x128xf32>
    %76 = arith.addf %74, %75 : vector<42x128xf32>
    %cst_32 = arith.constant dense<0.000000e+00> : vector<42x128xf32>
    %77 = tpu.matmul %18, %73, %cst_32 {dimension_numbers = #tpu.dot_dimension_numbers<[1], [0], [0], [1], [0, 0, 1, 1], [], []>} : vector<42x16xf32>, vector<16x128xf32>, vector<42x128xf32> -> vector<42x128xf32>
    %78 = arith.addf %76, %77 : vector<42x128xf32>
    %cst_33 = arith.constant 0.000000e+00 : f32
    %79 = vector.broadcast %cst_33 : f32 to vector<42x128xf32>
    %80 = arith.cmpf oge, %78, %79 : vector<42x128xf32>
    %cst_34 = arith.constant 2.000000e-01 : f32
    %81 = vector.broadcast %cst_34 : f32 to vector<42x128xf32>
    %82 = arith.mulf %78, %81 : vector<42x128xf32>
    %83 = arith.select %80, %78, %82 : vector<42x128xi1>, vector<42x128xf32>
    %84 = arith.truncf %83 : vector<42x128xf32> to vector<42x128xbf16>
    %85 = arith.extf %84 : vector<42x128xbf16> to vector<42x128xf32>
    %86 = arith.subf %83, %85 : vector<42x128xf32>
    %cst_35 = arith.constant dense<0.000000e+00> : vector<16x128xf32>
    %87 = tpu.matmul %22, %85, %cst_35 {dimension_numbers = #tpu.dot_dimension_numbers<[1], [0], [0], [1], [0, 0, 1, 1], [], []>} : vector<16x42xf32>, vector<42x128xf32>, vector<16x128xf32> -> vector<16x128xf32>
    %cst_36 = arith.constant dense<0.000000e+00> : vector<16x128xf32>
    %88 = tpu.matmul %23, %85, %cst_36 {dimension_numbers = #tpu.dot_dimension_numbers<[1], [0], [0], [1], [0, 0, 1, 1], [], []>} : vector<16x42xf32>, vector<42x128xf32>, vector<16x128xf32> -> vector<16x128xf32>
    %89 = arith.addf %87, %88 : vector<16x128xf32>
    %cst_37 = arith.constant dense<0.000000e+00> : vector<16x128xf32>
    %90 = tpu.matmul %22, %86, %cst_37 {dimension_numbers = #tpu.dot_dimension_numbers<[1], [0], [0], [1], [0, 0, 1, 1], [], []>} : vector<16x42xf32>, vector<42x128xf32>, vector<16x128xf32> -> vector<16x128xf32>
    %91 = arith.addf %89, %90 : vector<16x128xf32>
    %c32 = arith.constant 32 : index
    %c0_38 = arith.constant 0 : index
    %92 = vector.load %arg8[%c32, %c0_38] : memref<64x128xf32, #tpu.memory_space<vmem>>, vector<16x128xf32>
    tpu.vector_store %arg8[%c32, %c0_38], %91 {strides = array<i32>} : memref<64x128xf32, #tpu.memory_space<vmem>>, vector<16x128xf32>,
    %93 = vector.extract_strided_slice %15 {offsets = [48, 0], sizes = [16, 128], strides = [1, 1]} : vector<64x128xf32> to vector<16x128xf32>
    %94 = arith.truncf %93 : vector<16x128xf32> to vector<16x128xbf16>
    %95 = arith.extf %94 : vector<16x128xbf16> to vector<16x128xf32>
    %96 = arith.subf %93, %95 : vector<16x128xf32>
    %cst_39 = arith.constant dense<0.000000e+00> : vector<42x128xf32>
    %97 = tpu.matmul %18, %95, %cst_39 {dimension_numbers = #tpu.dot_dimension_numbers<[1], [0], [0], [1], [0, 0, 1, 1], [], []>} : vector<42x16xf32>, vector<16x128xf32>, vector<42x128xf32> -> vector<42x128xf32>
    %cst_40 = arith.constant dense<0.000000e+00> : vector<42x128xf32>
    %98 = tpu.matmul %19, %95, %cst_40 {dimension_numbers = #tpu.dot_dimension_numbers<[1], [0], [0], [1], [0, 0, 1, 1], [], []>} : vector<42x16xf32>, vector<16x128xf32>, vector<42x128xf32> -> vector<42x128xf32>
    %99 = arith.addf %97, %98 : vector<42x128xf32>
    %cst_41 = arith.constant dense<0.000000e+00> : vector<42x128xf32>
    %100 = tpu.matmul %18, %96, %cst_41 {dimension_numbers = #tpu.dot_dimension_numbers<[1], [0], [0], [1], [0, 0, 1, 1], [], []>} : vector<42x16xf32>, vector<16x128xf32>, vector<42x128xf32> -> vector<42x128xf32>
    %101 = arith.addf %99, %100 : vector<42x128xf32>
    %cst_42 = arith.constant 0.000000e+00 : f32
    %102 = vector.broadcast %cst_42 : f32 to vector<42x128xf32>
    %103 = arith.cmpf oge, %101, %102 : vector<42x128xf32>
    %cst_43 = arith.constant 2.000000e-01 : f32
    %104 = vector.broadcast %cst_43 : f32 to vector<42x128xf32>
    %105 = arith.mulf %101, %104 : vector<42x128xf32>
    %106 = arith.select %103, %101, %105 : vector<42x128xi1>, vector<42x128xf32>
    %107 = arith.truncf %106 : vector<42x128xf32> to vector<42x128xbf16>
    %108 = arith.extf %107 : vector<42x128xbf16> to vector<42x128xf32>
    %109 = arith.subf %106, %108 : vector<42x128xf32>
    %cst_44 = arith.constant dense<0.000000e+00> : vector<16x128xf32>
    %110 = tpu.matmul %22, %108, %cst_44 {dimension_numbers = #tpu.dot_dimension_numbers<[1], [0], [0], [1], [0, 0, 1, 1], [], []>} : vector<16x42xf32>, vector<42x128xf32>, vector<16x128xf32> -> vector<16x128xf32>
    %cst_45 = arith.constant dense<0.000000e+00> : vector<16x128xf32>
    %111 = tpu.matmul %23, %108, %cst_45 {dimension_numbers = #tpu.dot_dimension_numbers<[1], [0], [0], [1], [0, 0, 1, 1], [], []>} : vector<16x42xf32>, vector<42x128xf32>, vector<16x128xf32> -> vector<16x128xf32>
    %112 = arith.addf %110, %111 : vector<16x128xf32>
    %cst_46 = arith.constant dense<0.000000e+00> : vector<16x128xf32>
    %113 = tpu.matmul %22, %109, %cst_46 {dimension_numbers = #tpu.dot_dimension_numbers<[1], [0], [0], [1], [0, 0, 1, 1], [], []>} : vector<16x42xf32>, vector<42x128xf32>, vector<16x128xf32> -> vector<16x128xf32>
    %114 = arith.addf %112, %113 : vector<16x128xf32>
    %c48 = arith.constant 48 : index
    %c0_47 = arith.constant 0 : index
    %115 = vector.load %arg8[%c48, %c0_47] : memref<64x128xf32, #tpu.memory_space<vmem>>, vector<16x128xf32>
    tpu.vector_store %arg8[%c48, %c0_47], %114 {strides = array<i32>} : memref<64x128xf32, #tpu.memory_space<vmem>>, vector<16x128xf32>,
    %c0_48 = arith.constant 0 : index
    %c0_49 = arith.constant 0 : index
    %116 = vector.load %arg8[%c0_48, %c0_49] : memref<64x128xf32, #tpu.memory_space<vmem>>, vector<64x128xf32>
    %c0_50 = arith.constant 0 : index
    %c0_51 = arith.constant 0 : index
    %117 = vector.load %arg6[%c0_50, %c0_51] : memref<128x16xf32, #tpu.memory_space<vmem>>, vector<128x16xf32>
    %118 = arith.truncf %116 : vector<64x128xf32> to vector<64x128xbf16>
    %119 = arith.extf %118 : vector<64x128xbf16> to vector<64x128xf32>
    %120 = arith.subf %116, %119 : vector<64x128xf32>
    %121 = arith.truncf %117 : vector<128x16xf32> to vector<128x16xbf16>
    %122 = arith.extf %121 : vector<128x16xbf16> to vector<128x16xf32>
    %123 = arith.subf %117, %122 : vector<128x16xf32>
    %cst_52 = arith.constant dense<0.000000e+00> : vector<64x16xf32>
    %124 = tpu.matmul %119, %122, %cst_52 {dimension_numbers = #tpu.dot_dimension_numbers<[1], [0], [0], [1], [0, 0, 1, 1], [], []>} : vector<64x128xf32>, vector<128x16xf32>, vector<64x16xf32> -> vector<64x16xf32>
    %cst_53 = arith.constant dense<0.000000e+00> : vector<64x16xf32>
    %125 = tpu.matmul %120, %122, %cst_53 {dimension_numbers = #tpu.dot_dimension_numbers<[1], [0], [0], [1], [0, 0, 1, 1], [], []>} : vector<64x128xf32>, vector<128x16xf32>, vector<64x16xf32> -> vector<64x16xf32>
    %126 = arith.addf %124, %125 : vector<64x16xf32>
    %cst_54 = arith.constant dense<0.000000e+00> : vector<64x16xf32>
    %127 = tpu.matmul %119, %123, %cst_54 {dimension_numbers = #tpu.dot_dimension_numbers<[1], [0], [0], [1], [0, 0, 1, 1], [], []>} : vector<64x128xf32>, vector<128x16xf32>, vector<64x16xf32> -> vector<64x16xf32>
    %128 = arith.addf %126, %127 : vector<64x16xf32>
    %c0_55 = arith.constant 0 : index
    %c0_56 = arith.constant 0 : index
    %129 = vector.load %arg7[%c0_55, %c0_56] : memref<64x16xf32, #tpu.memory_space<vmem>>, vector<64x16xf32>
    tpu.vector_store %arg7[%c0_55, %c0_56], %128 {strides = array<i32>} : memref<64x16xf32, #tpu.memory_space<vmem>>, vector<64x16xf32>,
    return
  }
  func.func @transform_0(%arg0: i32) -> (i32, i32) {
    %c0_i32 = arith.constant 0 : i32
    %c0_i32_0 = arith.constant 0 : i32
    return %arg0, %c0_i32 : i32, i32
  }
  func.func @transform_1(%arg0: i32) -> (i32, i32) {
    %c0_i32 = arith.constant 0 : i32
    %c0_i32_0 = arith.constant 0 : i32
    return %arg0, %c0_i32 : i32, i32
  }
  func.func @transform_2(%arg0: i32) -> (i32, i32) {
    %c0_i32 = arith.constant 0 : i32
    %c0_i32_0 = arith.constant 0 : i32
    %c0_i32_1 = arith.constant 0 : i32
    return %c0_i32, %c0_i32_0 : i32, i32
  }
  func.func @transform_3(%arg0: i32) -> (i32, i32) {
    %c0_i32 = arith.constant 0 : i32
    %c0_i32_0 = arith.constant 0 : i32
    %c0_i32_1 = arith.constant 0 : i32
    return %c0_i32, %c0_i32_0 : i32, i32
  }
  func.func @transform_4(%arg0: i32) -> (i32, i32) {
    %c0_i32 = arith.constant 0 : i32
    %c0_i32_0 = arith.constant 0 : i32
    %c0_i32_1 = arith.constant 0 : i32
    return %c0_i32, %c0_i32_0 : i32, i32
  }
  func.func @transform_5(%arg0: i32) -> (i32, i32) {
    %c0_i32 = arith.constant 0 : i32
    %c0_i32_0 = arith.constant 0 : i32
    %c0_i32_1 = arith.constant 0 : i32
    return %c0_i32, %c0_i32_0 : i32, i32
  }
  func.func @transform_6(%arg0: i32) -> (i32, i32) {
    %c0_i32 = arith.constant 0 : i32
    %c0_i32_0 = arith.constant 0 : i32
    return %arg0, %c0_i32 : i32, i32
  }
}

</mosaic_0001>

<llo_original>
// kernel: tpu_custom_call.1
$region0: #{tpu_custom_call.1}
  #allocation0 [shape = 'u32[]', space=smem, size = 0x4, offset = 0x4, fixed_abs, tag = 'smem constant byte address 0x4 - core index']
  #allocation1 [shape = 'u32[72,128]{1,0:T(1,128)}', space=vmem, size = 0x9000, scoped, tag = 'internal scratch']
  #allocation2 [shape = 'f32[64,128]{1,0:T(8,128)}', space=vmem, size = 0x8000, scoped, tag = 'scratch operand']
  %s0 = inlined_call_operand.vmem [shape: f32[128,16], index: 0, kind: input, shape index: {}]
  %s1 = inlined_call_operand.vmem [shape: f32[128,1], index: 1, kind: input, shape index: {}]
  %s2 = inlined_call_operand.vmem [shape: f32[16,128], index: 2, kind: input, shape index: {}]
  %s3 = inlined_call_operand.vmem [shape: f32[42,16], index: 3, kind: input, shape index: {}]
  %s4 = inlined_call_operand.vmem [shape: f32[16,42], index: 4, kind: input, shape index: {}]
  %s5 = inlined_call_operand.vmem [shape: f32[128,16], index: 5, kind: input, shape index: {}]
  %s6 = inlined_call_operand.vmem [shape: f32[128,16], index: 6, kind: output, shape index: {}]
  %s7 = sld [smem:[#allocation0]]
  $region57: #{tpu_custom_call.1} parent=0
    _
  %s9 = ssub.s32 1, %s7
  %s10 = scalar_select 0, %s9, %s7
  loop: start=0, step=1, limit=4
  $region2: #{tpu_custom_call.1} parent=0 // loop_pre_header
    _
  $region3: #{tpu_custom_call.1} parent=0 // loop_header
    %s12 = sphi 0, %s16
    %p13 = scmp.ge.s32.totalorder %s12, 4
    %s22 = sphi 0, %s24
    %s25 = sphi 0, %s22
    %s26 = sphi 0, %s25
    %s42 = sphi 0, %s26
    %s48 = sphi 0, %s50
    %s51 = sphi 0, %s48
    %s52 = sphi 0, %s51
    %s68 = sphi 0, %s52
    %s72 = sphi 0, %s72
    %s74 = sphi 0, %s72
    %s75 = sphi 0, %s74
    %s89 = sphi 0, %s75
    %s93 = sphi 0, %s93
    %s95 = sphi 0, %s93
    %s96 = sphi 0, %s95
    %s110 = sphi 0, %s96
    %s114 = sphi 0, %s114
    %s116 = sphi 0, %s114
    %s117 = sphi 0, %s116
    %s131 = sphi 0, %s117
    %s135 = sphi 0, %s135
    %s137 = sphi 0, %s135
    %s138 = sphi 0, %s137
    %s152 = sphi 0, %s138
    %s158 = sphi 0, %s160
    %s161 = sphi 0, %s158
    %s162 = sphi 0, %s161
    %s178 = sphi 0, %s162
  $region4: #{tpu_custom_call.1} parent=0 // loop_header_branch
    %15 = sbr.rel (%p13) target = $region8
  $region5: #{tpu_custom_call.1} parent=0 // loop_body
    %s17 = ssub.s32 %s12, 1
    %s18 = ssub.s32 %s12, 2
    %s19 = sadd.s32 %s12, 1
    %s20 = ssub.s32 %s12, %s19
    %p21 = scmp.eq.s32.totalorder %s20, 0
    %s23 = sadd.s32 %s22, 1
    %s24 = scalar_select %p21, %s22, %s23
    %p27 = pneg %p21
    %p28 = scmp.eq.s32.totalorder %s12, 1
    %p29 = por %p27, %p28
    %p30 = scmp.ne.s32.totalorder %s22, %s25
    %p31 = scmp.eq.s32.totalorder %s12, 0
    %p32 = por %p30, %p31
    %p33 = scmp.ne.s32.totalorder %s22, %s25
    %p34 = scmp.eq.s32.totalorder %s17, 1
    %p35 = por %p33, %p34
    %p36 = scmp.ne.s32.totalorder %s25, %s26
    %p37 = scmp.eq.s32.totalorder %s17, 0
    %p38 = por %p36, %p37
    %p39 = scmp.ne.s32.totalorder %s25, %s26
    %p40 = scmp.eq.s32.totalorder %s18, 1
    %p41 = por %p39, %p40
    %p43 = scmp.ne.s32.totalorder %s26, %s42
    %p44 = scmp.eq.s32.totalorder %s18, 0
    %p45 = por %p43, %p44
    %s46 = ssub.s32 %s12, %s19
    %p47 = scmp.eq.s32.totalorder %s46, 0
    %s49 = sadd.s32 %s48, 1
    %s50 = scalar_select %p47, %s48, %s49
    %p53 = pneg %p47
    %p54 = scmp.eq.s32.totalorder %s12, 1
    %p55 = por %p53, %p54
    %p56 = scmp.ne.s32.totalorder %s48, %s51
    %p57 = scmp.eq.s32.totalorder %s12, 0
    %p58 = por %p56, %p57
    %p59 = scmp.ne.s32.totalorder %s48, %s51
    %p60 = scmp.eq.s32.totalorder %s17, 1
    %p61 = por %p59, %p60
    %p62 = scmp.ne.s32.totalorder %s51, %s52
    %p63 = scmp.eq.s32.totalorder %s17, 0
    %p64 = por %p62, %p63
    %p65 = scmp.ne.s32.totalorder %s51, %s52
    %p66 = scmp.eq.s32.totalorder %s18, 1
    %p67 = por %p65, %p66
    %p69 = scmp.ne.s32.totalorder %s52, %s68
    %p70 = scmp.eq.s32.totalorder %s18, 0
    %p71 = por %p69, %p70
    %s73 = sadd.s32 %s72, 1
    %p76 = scmp.eq.s32.totalorder %s12, 1
    %p77 = scmp.ne.s32.totalorder %s72, %s74
    %p78 = scmp.eq.s32.totalorder %s12, 0
    %p79 = por %p77, %p78
    %p80 = scmp.ne.s32.totalorder %s72, %s74
    %p81 = scmp.eq.s32.totalorder %s17, 1
    %p82 = por %p80, %p81
    %p83 = scmp.ne.s32.totalorder %s74, %s75
    %p84 = scmp.eq.s32.totalorder %s17, 0
    %p85 = por %p83, %p84
    %p86 = scmp.ne.s32.totalorder %s74, %s75
    %p87 = scmp.eq.s32.totalorder %s18, 1
    %p88 = por %p86, %p87
    %p90 = scmp.ne.s32.totalorder %s75, %s89
    %p91 = scmp.eq.s32.totalorder %s18, 0
    %p92 = por %p90, %p91
    %s94 = sadd.s32 %s93, 1
    %p97 = scmp.eq.s32.totalorder %s12, 1
    %p98 = scmp.ne.s32.totalorder %s93, %s95
    %p99 = scmp.eq.s32.totalorder %s12, 0
    %p100 = por %p98, %p99
    %p101 = scmp.ne.s32.totalorder %s93, %s95
    %p102 = scmp.eq.s32.totalorder %s17, 1
    %p103 = por %p101, %p102
    %p104 = scmp.ne.s32.totalorder %s95, %s96
    %p105 = scmp.eq.s32.totalorder %s17, 0
    %p106 = por %p104, %p105
    %p107 = scmp.ne.s32.totalorder %s95, %s96
    %p108 = scmp.eq.s32.totalorder %s18, 1
    %p109 = por %p107, %p108
    %p111 = scmp.ne.s32.totalorder %s96, %s110
    %p112 = scmp.eq.s32.totalorder %s18, 0
    %p113 = por %p111, %p112
    %s115 = sadd.s32 %s114, 1
    %p118 = scmp.eq.s32.totalorder %s12, 1
    %p119 = scmp.ne.s32.totalorder %s114, %s116
    %p120 = scmp.eq.s32.totalorder %s12, 0
    %p121 = por %p119, %p120
    %p122 = scmp.ne.s32.totalorder %s114, %s116
    %p123 = scmp.eq.s32.totalorder %s17, 1
    %p124 = por %p122, %p123
    %p125 = scmp.ne.s32.totalorder %s116, %s117
    %p126 = scmp.eq.s32.totalorder %s17, 0
    %p127 = por %p125, %p126
    %p128 = scmp.ne.s32.totalorder %s116, %s117
    %p129 = scmp.eq.s32.totalorder %s18, 1
    %p130 = por %p128, %p129
    %p132 = scmp.ne.s32.totalorder %s117, %s131
    %p133 = scmp.eq.s32.totalorder %s18, 0
    %p134 = por %p132, %p133
    %s136 = sadd.s32 %s135, 1
    %p139 = scmp.eq.s32.totalorder %s12, 1
    %p140 = scmp.ne.s32.totalorder %s135, %s137
    %p141 = scmp.eq.s32.totalorder %s12, 0
    %p142 = por %p140, %p141
    %p143 = scmp.ne.s32.totalorder %s135, %s137
    %p144 = scmp.eq.s32.totalorder %s17, 1
    %p145 = por %p143, %p144
    %p146 = scmp.ne.s32.totalorder %s137, %s138
    %p147 = scmp.eq.s32.totalorder %s17, 0
    %p148 = por %p146, %p147
    %p149 = scmp.ne.s32.totalorder %s137, %s138
    %p150 = scmp.eq.s32.totalorder %s18, 1
    %p151 = por %p149, %p150
    %p153 = scmp.ne.s32.totalorder %s138, %s152
    %p154 = scmp.eq.s32.totalorder %s18, 0
    %p155 = por %p153, %p154
    %s156 = ssub.s32 %s12, %s19
    %p157 = scmp.eq.s32.totalorder %s156, 0
    %s159 = sadd.s32 %s158, 1
    %s160 = scalar_select %p157, %s158, %s159
    %p163 = pneg %p157
    %p164 = scmp.eq.s32.totalorder %s12, 1
    %p165 = por %p163, %p164
    %p166 = scmp.ne.s32.totalorder %s158, %s161
    %p167 = scmp.eq.s32.totalorder %s12, 0
    %p168 = por %p166, %p167
    %p169 = scmp.ne.s32.totalorder %s158, %s161
    %p170 = scmp.eq.s32.totalorder %s17, 1
    %p171 = por %p169, %p170
    %p172 = scmp.ne.s32.totalorder %s161, %s162
    %p173 = scmp.eq.s32.totalorder %s17, 0
    %p174 = por %p172, %p173
    %p175 = scmp.ne.s32.totalorder %s161, %s162
    %p176 = scmp.eq.s32.totalorder %s18, 1
    %p177 = por %p175, %p176
    %p179 = scmp.ne.s32.totalorder %s162, %s178
    %p180 = scmp.eq.s32.totalorder %s18, 0
    %p181 = por %p179, %p180
    %p182 = scmp.le.s32.totalorder 1, %s12
    %p183 = scmp.lt.s32.totalorder %s12, 3
    %p184 = pnand %p182, %p183
    %p185 = pneg %p184
    // Predicated region
    $region9: #{tpu_custom_call.1} parent=5 // pred_check
      _
    $region10: #{tpu_custom_call.1} parent=5 // pred_check_branch
      %187 = sbr.rel (%p184) target = $region12
    $region11: #{tpu_custom_call.1} parent=5 // pred_region
      %s188 = ssub.s32 %s12, 1
      // Predicated region
      $region13: #{tpu_custom_call.1} parent=11 // pred_check
        %p189 = pneg %p85
      $region14: #{tpu_custom_call.1} parent=11 // pred_check_branch
        %191 = sbr.rel (%p189) target = $region16
      $region15: #{tpu_custom_call.1} parent=11 // pred_region
        _
      $region16: #{tpu_custom_call.1} parent=11 // pred_fallthru
        _
      // Predicated region
      $region17: #{tpu_custom_call.1} parent=11 // pred_check
        %p192 = pneg %p106
      $region18: #{tpu_custom_call.1} parent=11 // pred_check_branch
        %194 = sbr.rel (%p192) target = $region20
      $region19: #{tpu_custom_call.1} parent=11 // pred_region
        _
      $region20: #{tpu_custom_call.1} parent=11 // pred_fallthru
        _
      // Predicated region
      $region21: #{tpu_custom_call.1} parent=11 // pred_check
        %p195 = pneg %p127
      $region22: #{tpu_custom_call.1} parent=11 // pred_check_branch
        %197 = sbr.rel (%p195) target = $region24
      $region23: #{tpu_custom_call.1} parent=11 // pred_region
        _
      $region24: #{tpu_custom_call.1} parent=11 // pred_fallthru
        _
      // Predicated region
      $region25: #{tpu_custom_call.1} parent=11 // pred_check
        %p198 = pneg %p148
      $region26: #{tpu_custom_call.1} parent=11 // pred_check_branch
        %200 = sbr.rel (%p198) target = $region28
      $region27: #{tpu_custom_call.1} parent=11 // pred_region
        _
      $region28: #{tpu_custom_call.1} parent=11 // pred_fallthru
        _
    $region12: #{tpu_custom_call.1} parent=5 // pred_fallthru
      _
    %p201 = scmp.lt.s32.totalorder %s12, 2
    // Predicated region
    $region29: #{tpu_custom_call.1} parent=5 // pred_check
      %p202 = pneg %p201
    $region30: #{tpu_custom_call.1} parent=5 // pred_check_branch
      %204 = sbr.rel (%p202) target = $region32
    $region31: #{tpu_custom_call.1} parent=5 // pred_region
      // Predicated region
      $region33: #{tpu_custom_call.1} parent=31 // pred_check
        %p205 = pneg %p32
      $region34: #{tpu_custom_call.1} parent=31 // pred_check_branch
        %207 = sbr.rel (%p205) target = $region36
      $region35: #{tpu_custom_call.1} parent=31 // pred_region
        %s208 = smul.u32 8, %s12
        %p209 = scmp.lt.s32.totalorder %s208, 15
        %s210 = scalar_select %p209, %s208, 15
        %s211 = smul.addr %s210, 8
        %s212 = scalar_lea.vmem %s0, %s211
        %s213 = smul.u32 8, %s12
      $region36: #{tpu_custom_call.1} parent=31 // pred_fallthru
        _
      // Predicated region
      $region37: #{tpu_custom_call.1} parent=31 // pred_check
        %p214 = pneg %p58
      $region38: #{tpu_custom_call.1} parent=31 // pred_check_branch
        %216 = sbr.rel (%p214) target = $region40
      $region39: #{tpu_custom_call.1} parent=31 // pred_region
        %s217 = smul.u32 8, %s12
        %p218 = scmp.lt.s32.totalorder %s217, 15
        %s219 = scalar_select %p218, %s217, 15
        %s220 = smul.addr %s219, 8
        %s221 = scalar_lea.vmem %s1, %s220
        %s222 = smul.u32 8, %s12
      $region40: #{tpu_custom_call.1} parent=31 // pred_fallthru
        _
    $region32: #{tpu_custom_call.1} parent=5 // pred_fallthru
      _
    %p223 = scmp.le.s32.totalorder 1, %s12
    %p224 = scmp.lt.s32.totalorder %s12, 3
    %p225 = pnand %p223, %p224
    %p226 = pneg %p225
    // Predicated region
    $region41: #{tpu_custom_call.1} parent=5 // pred_check
      _
    $region42: #{tpu_custom_call.1} parent=5 // pred_check_branch
      %228 = sbr.rel (%p225) target = $region44
    $region43: #{tpu_custom_call.1} parent=5 // pred_region
      %s229 = ssub.s32 %s12, 1
      %s230 = smul.u32 8, %s17
      %p231 = scmp.lt.s32.totalorder %s230, 15
      %s232 = scalar_select %p231, %s230, 15
      %s233 = smul.addr %s232, 8
      %s234 = scalar_lea.vmem %s0, %s233
      %p235 = pneg %p38
      %p236 = pneg %p35
      %s237 = smul.u32 8, %s17
      %p238 = scmp.lt.s32.totalorder %s237, 15
      %s239 = scalar_select %p238, %s237, 15
      %s240 = smul.addr %s239, 8
      %s241 = scalar_lea.vmem %s1, %s240
      %p242 = pneg %p64
      %p243 = pneg %p61
      %p244 = pneg %p85
      %p245 = pneg %p82
      %p246 = pneg %p106
      %p247 = pneg %p103
      %p248 = pneg %p127
      %p249 = pneg %p124
      %p250 = pneg %p148
      %p251 = pneg %p145
      %p252 = pneg %p174
      %p253 = pneg %p171
      %s254 = smul.u32 8, %s17
      %p255 = scmp.lt.s32.totalorder %s254, 15
      %s256 = scalar_select %p255, %s254, 15
      %s257 = smul.addr %s256, 8
      %s258 = scalar_lea.vmem %s6, %s257
      %s259 = smul.u32 8, %s17
      %p260 = scmp.lt.s32.totalorder %s259, 15
      %s261 = scalar_select %p260, %s259, 15
      %s262 = smul.addr %s261, 8
      %s263 = scalar_lea.vmem %s0, %s262
      %s264 = smul.u32 8, %s17
      %s265 = smul.u32 8, %s17
      %p266 = scmp.lt.s32.totalorder %s265, 15
      %s267 = scalar_select %p266, %s265, 15
      %s268 = smul.addr %s267, 8
      %s269 = scalar_lea.vmem %s1, %s268
      %s270 = smul.u32 8, %s17
      %s271 = smul.u32 8, %s17
      %p272 = scmp.lt.s32.totalorder %s271, 15
      %s273 = scalar_select %p272, %s271, 15
      %s274 = smul.addr %s273, 8
      %s275 = scalar_lea.vmem %s6, %s274
      %s276 = smul.u32 8, %s17
      %v277 = vld [vmem:[%s263] sm:$0xff]
      %v278 = vld [vmem:[%s263 + $0x8] sm:$0xff]
      %v279 = vld [vmem:[%s263 + $0x10] sm:$0xff]
      %v280 = vld [vmem:[%s263 + $0x18] sm:$0xff]
      %v281 = vld [vmem:[%s263 + $0x20] sm:$0xff]
      %v282 = vld [vmem:[%s263 + $0x28] sm:$0xff]
      %v283 = vld [vmem:[%s263 + $0x30] sm:$0xff]
      %v284 = vld [vmem:[%s263 + $0x38] sm:$0xff]
      %v285 = vld [vmem:[%s269] sm:$0xff]
      %v286 = vld [vmem:[%s269 + $0x8] sm:$0xff]
      %v287 = vld [vmem:[%s269 + $0x10] sm:$0xff]
      %v288 = vld [vmem:[%s269 + $0x18] sm:$0xff]
      %v289 = vld [vmem:[%s269 + $0x20] sm:$0xff]
      %v290 = vld [vmem:[%s269 + $0x28] sm:$0xff]
      %v291 = vld [vmem:[%s269 + $0x30] sm:$0xff]
      %v292 = vld [vmem:[%s269 + $0x38] sm:$0xff]
      %294 = vset.pattern.permute.xlu0 0
      %295 = vperm.xlu0 %294, %v285
      %v296 = vpop.permute.xlu0 %295
      %299 = vset.pattern.permute.xlu0 0
      %300 = vperm.xlu0 %299, %v286
      %v301 = vpop.permute.xlu0 %300
      %304 = vset.pattern.permute.xlu0 0
      %305 = vperm.xlu0 %304, %v287
      %v306 = vpop.permute.xlu0 %305
      %309 = vset.pattern.permute.xlu0 0
      %310 = vperm.xlu0 %309, %v288
      %v311 = vpop.permute.xlu0 %310
      %314 = vset.pattern.permute.xlu0 0
      %315 = vperm.xlu0 %314, %v289
      %v316 = vpop.permute.xlu0 %315
      %319 = vset.pattern.permute.xlu0 0
      %320 = vperm.xlu0 %319, %v290
      %v321 = vpop.permute.xlu0 %320
      %324 = vset.pattern.permute.xlu0 0
      %325 = vperm.xlu0 %324, %v291
      %v326 = vpop.permute.xlu0 %325
      %329 = vset.pattern.permute.xlu0 0
      %330 = vperm.xlu0 %329, %v292
      %v331 = vpop.permute.xlu0 %330
      %v333 = vadd.f32 %v277, %v296
      %v334 = vadd.f32 %v278, %v301
      %v335 = vadd.f32 %v279, %v306
      %v336 = vadd.f32 %v280, %v311
      %v337 = vadd.f32 %v281, %v316
      %v338 = vadd.f32 %v282, %v321
      %v339 = vadd.f32 %v283, %v326
      %v340 = vadd.f32 %v284, %v331
      %v341 = vld [vmem:[%s2] sm:$0xff]
      %v342 = vld [vmem:[%s2 + $0x8] sm:$0xff]
      %v343 = vpack.c.bf16 %v333, %v333
      %v344 = vpack.c.bf16 %v334, %v334
      %v345 = vpack.c.bf16 %v335, %v335
      %v346 = vpack.c.bf16 %v336, %v336
      %v347 = vpack.c.bf16 %v337, %v337
      %v348 = vpack.c.bf16 %v338, %v338
      %v349 = vpack.c.bf16 %v339, %v339
      %v350 = vpack.c.bf16 %v340, %v340
      %v351 = vunpack.c.l.bf16 %v343
      %v352 = vunpack.c.l.bf16 %v344
      %v353 = vunpack.c.l.bf16 %v345
      %v354 = vunpack.c.l.bf16 %v346
      %v355 = vunpack.c.l.bf16 %v347
      %v356 = vunpack.c.l.bf16 %v348
      %v357 = vunpack.c.l.bf16 %v349
      %v358 = vunpack.c.l.bf16 %v350
      %v359 = vsub.f32 %v333, %v351
      %v360 = vsub.f32 %v334, %v352
      %v361 = vsub.f32 %v335, %v353
      %v362 = vsub.f32 %v336, %v354
      %v363 = vsub.f32 %v337, %v355
      %v364 = vsub.f32 %v338, %v356
      %v365 = vsub.f32 %v339, %v357
      %v366 = vsub.f32 %v340, %v358
      %v367 = vpack.c.bf16 %v341, %v341
      %v368 = vpack.c.bf16 %v342, %v342
      %v369 = vunpack.c.l.bf16 %v367
      %v370 = vunpack.c.l.bf16 %v368
      %v371 = vsub.f32 %v341, %v369
      %v372 = vsub.f32 %v342, %v370
      %vm373 = vcmask 130048
      %v375 = vsel %vm373, %v359, 0
      %v378 = vsel %vm373, %v360, 0
      %v381 = vsel %vm373, %v361, 0
      %v384 = vsel %vm373, %v362, 0
      %v387 = vsel %vm373, %v363, 0
      %v390 = vsel %vm373, %v364, 0
      %v393 = vsel %vm373, %v365, 0
      %v396 = vsel %vm373, %v366, 0
      %398 = vmatpush.msra.mxu0 0.0
      %399 = vmatpush.msra.mxu0 0.0
      %400 = vmatpush.msra.mxu0 0.0
      %401 = vmatpush.msra.mxu0 0.0
      %402 = vmatpush.msra.mxu0 0.0
      %403 = vmatpush.msra.mxu0 0.0
      %404 = vmatpush.msra.mxu0 0.0
      %405 = vmatpush.msra.mxu0 0.0
      %406 = vmatpush.msra.mxu0 0.0
      %407 = vmatpush.msra.mxu0 0.0
      %408 = vmatpush.msra.mxu0 0.0
      %409 = vmatpush.msra.mxu0 0.0
      %410 = vmatpush.msra.mxu0 0.0
      %411 = vmatpush.msra.mxu0 0.0
      %412 = vmatpush.msra.mxu0 %v370
      %413 = vmatpush.msra.mxu0 %v369
      %414 = vmatmul.f32.gmra.mxu0 %v375
      %v415 = vpop.f32.mrf.mxu0
      %v416 = vadd.f32 0.0, %v415
      %417 = vmatmul.f32.gmra.mxu0 %v378
      %v418 = vpop.f32.mrf.mxu0
      %v419 = vadd.f32 0.0, %v418
      %420 = vmatmul.f32.gmra.mxu0 %v381
      %v421 = vpop.f32.mrf.mxu0
      %v422 = vadd.f32 0.0, %v421
      %423 = vmatmul.f32.gmra.mxu0 %v384
      %v424 = vpop.f32.mrf.mxu0
      %v425 = vadd.f32 0.0, %v424
      %426 = vmatmul.f32.gmra.mxu0 %v387
      %v427 = vpop.f32.mrf.mxu0
      %v428 = vadd.f32 0.0, %v427
      %429 = vmatmul.f32.gmra.mxu0 %v390
      %v430 = vpop.f32.mrf.mxu0
      %v431 = vadd.f32 0.0, %v430
      %432 = vmatmul.f32.gmra.mxu0 %v393
      %v433 = vpop.f32.mrf.mxu0
      %v434 = vadd.f32 0.0, %v433
      %435 = vmatmul.f32.gmra.mxu0 %v396
      %v436 = vpop.f32.mrf.mxu0
      %v437 = vadd.f32 0.0, %v436
      %438 = vdwg.mxu0
      %v440 = vsel %vm373, %v351, 0
      %v443 = vsel %vm373, %v352, 0
      %v446 = vsel %vm373, %v353, 0
      %v449 = vsel %vm373, %v354, 0
      %v452 = vsel %vm373, %v355, 0
      %v455 = vsel %vm373, %v356, 0
      %v458 = vsel %vm373, %v357, 0
      %v461 = vsel %vm373, %v358, 0
      %463 = vmatpush.msra.mxu0 0.0
      %464 = vmatpush.msra.mxu0 0.0
      %465 = vmatpush.msra.mxu0 0.0
      %466 = vmatpush.msra.mxu0 0.0
      %467 = vmatpush.msra.mxu0 0.0
      %468 = vmatpush.msra.mxu0 0.0
      %469 = vmatpush.msra.mxu0 0.0
      %470 = vmatpush.msra.mxu0 0.0
      %471 = vmatpush.msra.mxu0 0.0
      %472 = vmatpush.msra.mxu0 0.0
      %473 = vmatpush.msra.mxu0 0.0
      %474 = vmatpush.msra.mxu0 0.0
      %475 = vmatpush.msra.mxu0 0.0
      %476 = vmatpush.msra.mxu0 0.0
      %477 = vmatpush.msra.mxu0 %v370
      %478 = vmatpush.msra.mxu0 %v369
      %479 = vmatmul.f32.gmra.mxu0 %v440
      %v480 = vpop.f32.mrf.mxu0
      %v481 = vadd.f32 %v416, %v480
      %482 = vmatmul.f32.gmra.mxu0 %v443
      %v483 = vpop.f32.mrf.mxu0
      %v484 = vadd.f32 %v419, %v483
      %485 = vmatmul.f32.gmra.mxu0 %v446
      %v486 = vpop.f32.mrf.mxu0
      %v487 = vadd.f32 %v422, %v486
      %488 = vmatmul.f32.gmra.mxu0 %v449
      %v489 = vpop.f32.mrf.mxu0
      %v490 = vadd.f32 %v425, %v489
      %491 = vmatmul.f32.gmra.mxu0 %v452
      %v492 = vpop.f32.mrf.mxu0
      %v493 = vadd.f32 %v428, %v492
      %494 = vmatmul.f32.gmra.mxu0 %v455
      %v495 = vpop.f32.mrf.mxu0
      %v496 = vadd.f32 %v431, %v495
      %497 = vmatmul.f32.gmra.mxu0 %v458
      %v498 = vpop.f32.mrf.mxu0
      %v499 = vadd.f32 %v434, %v498
      %500 = vmatmul.f32.gmra.mxu0 %v461
      %v501 = vpop.f32.mrf.mxu0
      %v502 = vadd.f32 %v437, %v501
      %503 = vdwg.mxu0
      %504 = vmatpush.msra.mxu0 0.0
      %505 = vmatpush.msra.mxu0 0.0
      %506 = vmatpush.msra.mxu0 0.0
      %507 = vmatpush.msra.mxu0 0.0
      %508 = vmatpush.msra.mxu0 0.0
      %509 = vmatpush.msra.mxu0 0.0
      %510 = vmatpush.msra.mxu0 0.0
      %511 = vmatpush.msra.mxu0 0.0
      %512 = vmatpush.msra.mxu0 0.0
      %513 = vmatpush.msra.mxu0 0.0
      %514 = vmatpush.msra.mxu0 0.0
      %515 = vmatpush.msra.mxu0 0.0
      %516 = vmatpush.msra.mxu0 0.0
      %517 = vmatpush.msra.mxu0 0.0
      %518 = vmatpush.msra.mxu0 %v372
      %519 = vmatpush.msra.mxu0 %v371
      %520 = vmatmul.f32.gmra.mxu0 %v440
      %v521 = vpop.f32.mrf.mxu0
      %v522 = vadd.f32 0.0, %v521
      %523 = vmatmul.f32.gmra.mxu0 %v443
      %v524 = vpop.f32.mrf.mxu0
      %v525 = vadd.f32 0.0, %v524
      %526 = vmatmul.f32.gmra.mxu0 %v446
      %v527 = vpop.f32.mrf.mxu0
      %v528 = vadd.f32 0.0, %v527
      %529 = vmatmul.f32.gmra.mxu0 %v449
      %v530 = vpop.f32.mrf.mxu0
      %v531 = vadd.f32 0.0, %v530
      %532 = vmatmul.f32.gmra.mxu0 %v452
      %v533 = vpop.f32.mrf.mxu0
      %v534 = vadd.f32 0.0, %v533
      %535 = vmatmul.f32.gmra.mxu0 %v455
      %v536 = vpop.f32.mrf.mxu0
      %v537 = vadd.f32 0.0, %v536
      %538 = vmatmul.f32.gmra.mxu0 %v458
      %v539 = vpop.f32.mrf.mxu0
      %v540 = vadd.f32 0.0, %v539
      %541 = vmatmul.f32.gmra.mxu0 %v461
      %v542 = vpop.f32.mrf.mxu0
      %v543 = vadd.f32 0.0, %v542
      %544 = vdwg.mxu0
      %v545 = vadd.f32 %v481, %v522
      %v546 = vadd.f32 %v484, %v525
      %v547 = vadd.f32 %v487, %v528
      %v548 = vadd.f32 %v490, %v531
      %v549 = vadd.f32 %v493, %v534
      %v550 = vadd.f32 %v496, %v537
      %v551 = vadd.f32 %v499, %v540
      %v552 = vadd.f32 %v502, %v543
      %v553 = vld [vmem:[%s3] sm:$0xff]
      %v554 = vld [vmem:[%s3 + $0x8] sm:$0xff]
      %v555 = vld [vmem:[%s3 + $0x10] sm:$0xff]
      %v556 = vld [vmem:[%s3 + $0x18] sm:$0xff]
      %v557 = vld [vmem:[%s3 + $0x20] sm:$0xff]
      %v558 = vld [vmem:[%s3 + $0x28] sm:$0x3]
      %v559 = vpack.c.bf16 %v553, %v553
      %v560 = vpack.c.bf16 %v554, %v554
      %v561 = vpack.c.bf16 %v555, %v555
      %v562 = vpack.c.bf16 %v556, %v556
      %v563 = vpack.c.bf16 %v557, %v557
      %v564 = vpack.c.bf16 %v558, %v558
      %v565 = vunpack.c.l.bf16 %v559
      %v566 = vunpack.c.l.bf16 %v560
      %v567 = vunpack.c.l.bf16 %v561
      %v568 = vunpack.c.l.bf16 %v562
      %v569 = vunpack.c.l.bf16 %v563
      %v570 = vunpack.c.l.bf16 %v564
      %v571 = vsub.f32 %v553, %v565
      %v572 = vsub.f32 %v554, %v566
      %v573 = vsub.f32 %v555, %v567
      %v574 = vsub.f32 %v556, %v568
      %v575 = vsub.f32 %v557, %v569
      %v576 = vsub.f32 %v558, %v570
      %v577 = vld [vmem:[%s4] sm:$0xff]
      %v578 = vld [vmem:[%s4 + $0x8] sm:$0xff]
      %v579 = vpack.c.bf16 %v577, %v577
      %v580 = vpack.c.bf16 %v578, %v578
      %v581 = vunpack.c.l.bf16 %v579
      %v582 = vunpack.c.l.bf16 %v580
      %v583 = vsub.f32 %v577, %v581
      %v584 = vsub.f32 %v578, %v582
      %v585 = vpack.c.bf16 %v545, %v545
      %v586 = vpack.c.bf16 %v546, %v546
      %v587 = vunpack.c.l.bf16 %v585
      %v588 = vunpack.c.l.bf16 %v586
      %v589 = vsub.f32 %v545, %v587
      %v590 = vsub.f32 %v546, %v588
      %v592 = vsel %vm373, %v571, 0
      %v595 = vsel %vm373, %v572, 0
      %v598 = vsel %vm373, %v573, 0
      %v601 = vsel %vm373, %v574, 0
      %v604 = vsel %vm373, %v575, 0
      %v607 = vsel %vm373, %v576, 0
      %609 = vmatpush.msra.mxu0 0.0
      %610 = vmatpush.msra.mxu0 0.0
      %611 = vmatpush.msra.mxu0 0.0
      %612 = vmatpush.msra.mxu0 0.0
      %613 = vmatpush.msra.mxu0 0.0
      %614 = vmatpush.msra.mxu0 0.0
      %615 = vmatpush.msra.mxu0 0.0
      %616 = vmatpush.msra.mxu0 0.0
      %617 = vmatpush.msra.mxu0 0.0
      %618 = vmatpush.msra.mxu0 0.0
      %619 = vmatpush.msra.mxu0 0.0
      %620 = vmatpush.msra.mxu0 0.0
      %621 = vmatpush.msra.mxu0 0.0
      %622 = vmatpush.msra.mxu0 0.0
      %623 = vmatpush.msra.mxu0 %v588
      %624 = vmatpush.msra.mxu0 %v587
      %625 = vmatmul.f32.gmra.mxu0 %v592
      %v626 = vpop.f32.mrf.mxu0
      %v627 = vadd.f32 0.0, %v626
      %628 = vmatmul.f32.gmra.mxu0 %v595
      %v629 = vpop.f32.mrf.mxu0
      %v630 = vadd.f32 0.0, %v629
      %631 = vmatmul.f32.gmra.mxu0 %v598
      %v632 = vpop.f32.mrf.mxu0
      %v633 = vadd.f32 0.0, %v632
      %634 = vmatmul.f32.gmra.mxu0 %v601
      %v635 = vpop.f32.mrf.mxu0
      %v636 = vadd.f32 0.0, %v635
      %637 = vmatmul.f32.gmra.mxu0 %v604
      %v638 = vpop.f32.mrf.mxu0
      %v639 = vadd.f32 0.0, %v638
      %640 = vmatmul.f32.gmra.mxu0 %v607
      %v641 = vpop.f32.mrf.mxu0
      %v642 = vadd.f32 0.0, %v641
      %643 = vdwg.mxu0
      %v645 = vsel %vm373, %v565, 0
      %v648 = vsel %vm373, %v566, 0
      %v651 = vsel %vm373, %v567, 0
      %v654 = vsel %vm373, %v568, 0
      %v657 = vsel %vm373, %v569, 0
      %v660 = vsel %vm373, %v570, 0
      %662 = vmatpush.msra.mxu0 0.0
      %663 = vmatpush.msra.mxu0 0.0
      %664 = vmatpush.msra.mxu0 0.0
      %665 = vmatpush.msra.mxu0 0.0
      %666 = vmatpush.msra.mxu0 0.0
      %667 = vmatpush.msra.mxu0 0.0
      %668 = vmatpush.msra.mxu0 0.0
      %669 = vmatpush.msra.mxu0 0.0
      %670 = vmatpush.msra.mxu0 0.0
      %671 = vmatpush.msra.mxu0 0.0
      %672 = vmatpush.msra.mxu0 0.0
      %673 = vmatpush.msra.mxu0 0.0
      %674 = vmatpush.msra.mxu0 0.0
      %675 = vmatpush.msra.mxu0 0.0
      %676 = vmatpush.msra.mxu0 %v588
      %677 = vmatpush.msra.mxu0 %v587
      %678 = vmatmul.f32.gmra.mxu0 %v645
      %v679 = vpop.f32.mrf.mxu0
      %v680 = vadd.f32 %v627, %v679
      %681 = vmatmul.f32.gmra.mxu0 %v648
      %v682 = vpop.f32.mrf.mxu0
      %v683 = vadd.f32 %v630, %v682
      %684 = vmatmul.f32.gmra.mxu0 %v651
      %v685 = vpop.f32.mrf.mxu0
      %v686 = vadd.f32 %v633, %v685
      %687 = vmatmul.f32.gmra.mxu0 %v654
      %v688 = vpop.f32.mrf.mxu0
      %v689 = vadd.f32 %v636, %v688
      %690 = vmatmul.f32.gmra.mxu0 %v657
      %v691 = vpop.f32.mrf.mxu0
      %v692 = vadd.f32 %v639, %v691
      %693 = vmatmul.f32.gmra.mxu0 %v660
      %v694 = vpop.f32.mrf.mxu0
      %v695 = vadd.f32 %v642, %v694
      %696 = vdwg.mxu0
      %697 = vmatpush.msra.mxu0 0.0
      %698 = vmatpush.msra.mxu0 0.0
      %699 = vmatpush.msra.mxu0 0.0
      %700 = vmatpush.msra.mxu0 0.0
      %701 = vmatpush.msra.mxu0 0.0
      %702 = vmatpush.msra.mxu0 0.0
      %703 = vmatpush.msra.mxu0 0.0
      %704 = vmatpush.msra.mxu0 0.0
      %705 = vmatpush.msra.mxu0 0.0
      %706 = vmatpush.msra.mxu0 0.0
      %707 = vmatpush.msra.mxu0 0.0
      %708 = vmatpush.msra.mxu0 0.0
      %709 = vmatpush.msra.mxu0 0.0
      %710 = vmatpush.msra.mxu0 0.0
      %711 = vmatpush.msra.mxu0 %v590
      %712 = vmatpush.msra.mxu0 %v589
      %713 = vmatmul.f32.gmra.mxu0 %v645
      %v714 = vpop.f32.mrf.mxu0
      %v715 = vadd.f32 0.0, %v714
      %716 = vmatmul.f32.gmra.mxu0 %v648
      %v717 = vpop.f32.mrf.mxu0
      %v718 = vadd.f32 0.0, %v717
      %719 = vmatmul.f32.gmra.mxu0 %v651
      %v720 = vpop.f32.mrf.mxu0
      %v721 = vadd.f32 0.0, %v720
      %722 = vmatmul.f32.gmra.mxu0 %v654
      %v723 = vpop.f32.mrf.mxu0
      %v724 = vadd.f32 0.0, %v723
      %725 = vmatmul.f32.gmra.mxu0 %v657
      %v726 = vpop.f32.mrf.mxu0
      %v727 = vadd.f32 0.0, %v726
      %728 = vmatmul.f32.gmra.mxu0 %v660
      %v729 = vpop.f32.mrf.mxu0
      %v730 = vadd.f32 0.0, %v729
      %731 = vdwg.mxu0
      %v732 = vadd.f32 %v680, %v715
      %v733 = vadd.f32 %v683, %v718
      %v734 = vadd.f32 %v686, %v721
      %v735 = vadd.f32 %v689, %v724
      %v736 = vadd.f32 %v692, %v727
      %v737 = vadd.f32 %v695, %v730
      %vm738 = vcmp.ge.f32.partialorder %v732, 0.0
      %vm739 = vcmp.ge.f32.partialorder %v733, 0.0
      %vm740 = vcmp.ge.f32.partialorder %v734, 0.0
      %vm741 = vcmp.ge.f32.partialorder %v735, 0.0
      %vm742 = vcmp.ge.f32.partialorder %v736, 0.0
      %vm743 = vcmp.ge.f32.partialorder %v737, 0.0
      %v744 = vmul.f32 %v732, 0.2
      %v745 = vmul.f32 %v733, 0.2
      %v746 = vmul.f32 %v734, 0.2
      %v747 = vmul.f32 %v735, 0.2
      %v748 = vmul.f32 %v736, 0.2
      %v749 = vmul.f32 %v737, 0.2
      %v750 = vsel %vm738, %v732, %v744
      %v751 = vsel %vm739, %v733, %v745
      %v752 = vsel %vm740, %v734, %v746
      %v753 = vsel %vm741, %v735, %v747
      %v754 = vsel %vm742, %v736, %v748
      %v755 = vsel %vm743, %v737, %v749
      %v756 = vpack.c.bf16 %v750, %v750
      %v757 = vpack.c.bf16 %v751, %v751
      %v758 = vpack.c.bf16 %v752, %v752
      %v759 = vpack.c.bf16 %v753, %v753
      %v760 = vpack.c.bf16 %v754, %v754
      %v761 = vpack.c.bf16 %v755, %v755
      %v762 = vunpack.c.l.bf16 %v756
      %v763 = vunpack.c.l.bf16 %v757
      %v764 = vunpack.c.l.bf16 %v758
      %v765 = vunpack.c.l.bf16 %v759
      %v766 = vunpack.c.l.bf16 %v760
      %v767 = vunpack.c.l.bf16 %v761
      %v768 = vsub.f32 %v750, %v762
      %v769 = vsub.f32 %v751, %v763
      %v770 = vsub.f32 %v752, %v764
      %v771 = vsub.f32 %v753, %v765
      %v772 = vsub.f32 %v754, %v766
      %v773 = vsub.f32 %v755, %v767
      %vm774 = vcmask 343040
      %v776 = vsel %vm774, %v583, 0
      %v779 = vsel %vm774, %v584, 0
      %vm781 = vcmask 1041408
      %v783 = vsel %vm781, %v767, 0
      %785 = vmatpush.msra.mxu0 0.0
      %786 = vmatpush.msra.mxu0 0.0
      %787 = vmatpush.msra.mxu0 0.0
      %788 = vmatpush.msra.mxu0 0.0
      %789 = vmatpush.msra.mxu0 0.0
      %790 = vmatpush.msra.mxu0 0.0
      %791 = vmatpush.msra.mxu0 0.0
      %792 = vmatpush.msra.mxu0 0.0
      %793 = vmatpush.msra.mxu0 0.0
      %794 = vmatpush.msra.mxu0 0.0
      %795 = vmatpush.msra.mxu0 %v783
      %796 = vmatpush.msra.mxu0 %v766
      %797 = vmatpush.msra.mxu0 %v765
      %798 = vmatpush.msra.mxu0 %v764
      %799 = vmatpush.msra.mxu0 %v763
      %800 = vmatpush.msra.mxu0 %v762
      %801 = vmatmul.f32.gmra.mxu0 %v776
      %v802 = vpop.f32.mrf.mxu0
      %v803 = vadd.f32 0.0, %v802
      %804 = vmatmul.f32.gmra.mxu0 %v779
      %v805 = vpop.f32.mrf.mxu0
      %v806 = vadd.f32 0.0, %v805
      %807 = vdwg.mxu0
      %v809 = vsel %vm774, %v581, 0
      %v812 = vsel %vm774, %v582, 0
      %814 = vmatpush.msra.mxu0 0.0
      %815 = vmatpush.msra.mxu0 0.0
      %816 = vmatpush.msra.mxu0 0.0
      %817 = vmatpush.msra.mxu0 0.0
      %818 = vmatpush.msra.mxu0 0.0
      %819 = vmatpush.msra.mxu0 0.0
      %820 = vmatpush.msra.mxu0 0.0
      %821 = vmatpush.msra.mxu0 0.0
      %822 = vmatpush.msra.mxu0 0.0
      %823 = vmatpush.msra.mxu0 0.0
      %824 = vmatpush.msra.mxu0 %v783
      %825 = vmatpush.msra.mxu0 %v766
      %826 = vmatpush.msra.mxu0 %v765
      %827 = vmatpush.msra.mxu0 %v764
      %828 = vmatpush.msra.mxu0 %v763
      %829 = vmatpush.msra.mxu0 %v762
      %830 = vmatmul.f32.gmra.mxu0 %v809
      %v831 = vpop.f32.mrf.mxu0
      %v832 = vadd.f32 %v803, %v831
      %833 = vmatmul.f32.gmra.mxu0 %v812
      %v834 = vpop.f32.mrf.mxu0
      %v835 = vadd.f32 %v806, %v834
      %836 = vdwg.mxu0
      %v838 = vsel %vm781, %v773, 0
      %840 = vmatpush.msra.mxu0 0.0
      %841 = vmatpush.msra.mxu0 0.0
      %842 = vmatpush.msra.mxu0 0.0
      %843 = vmatpush.msra.mxu0 0.0
      %844 = vmatpush.msra.mxu0 0.0
      %845 = vmatpush.msra.mxu0 0.0
      %846 = vmatpush.msra.mxu0 0.0
      %847 = vmatpush.msra.mxu0 0.0
      %848 = vmatpush.msra.mxu0 0.0
      %849 = vmatpush.msra.mxu0 0.0
      %850 = vmatpush.msra.mxu0 %v838
      %851 = vmatpush.msra.mxu0 %v772
      %852 = vmatpush.msra.mxu0 %v771
      %853 = vmatpush.msra.mxu0 %v770
      %854 = vmatpush.msra.mxu0 %v769
      %855 = vmatpush.msra.mxu0 %v768
      %856 = vmatmul.f32.gmra.mxu0 %v809
      %v857 = vpop.f32.mrf.mxu0
      %v858 = vadd.f32 0.0, %v857
      %859 = vmatmul.f32.gmra.mxu0 %v812
      %v860 = vpop.f32.mrf.mxu0
      %v861 = vadd.f32 0.0, %v860
      %862 = vdwg.mxu0
      %v863 = vadd.f32 %v832, %v858
      %v864 = vadd.f32 %v835, %v861
      %865 = vst [vmem:[#allocation2] sm:$0xff] %v863
      %866 = vst [vmem:[#allocation2 + $0x8] sm:$0xff] %v864
      %v867 = vpack.c.bf16 %v547, %v547
      %v868 = vpack.c.bf16 %v548, %v548
      %v869 = vunpack.c.l.bf16 %v867
      %v870 = vunpack.c.l.bf16 %v868
      %v871 = vsub.f32 %v547, %v869
      %v872 = vsub.f32 %v548, %v870
      %873 = vmatpush.msra.mxu0 0.0
      %874 = vmatpush.msra.mxu0 0.0
      %875 = vmatpush.msra.mxu0 0.0
      %876 = vmatpush.msra.mxu0 0.0
      %877 = vmatpush.msra.mxu0 0.0
      %878 = vmatpush.msra.mxu0 0.0
      %879 = vmatpush.msra.mxu0 0.0
      %880 = vmatpush.msra.mxu0 0.0
      %881 = vmatpush.msra.mxu0 0.0
      %882 = vmatpush.msra.mxu0 0.0
      %883 = vmatpush.msra.mxu0 0.0
      %884 = vmatpush.msra.mxu0 0.0
      %885 = vmatpush.msra.mxu0 0.0
      %886 = vmatpush.msra.mxu0 0.0
      %887 = vmatpush.msra.mxu0 %v870
      %888 = vmatpush.msra.mxu0 %v869
      %889 = vmatmul.f32.gmra.mxu0 %v592
      %v890 = vpop.f32.mrf.mxu0
      %v891 = vadd.f32 0.0, %v890
      %892 = vmatmul.f32.gmra.mxu0 %v595
      %v893 = vpop.f32.mrf.mxu0
      %v894 = vadd.f32 0.0, %v893
      %895 = vmatmul.f32.gmra.mxu0 %v598
      %v896 = vpop.f32.mrf.mxu0
      %v897 = vadd.f32 0.0, %v896
      %898 = vmatmul.f32.gmra.mxu0 %v601
      %v899 = vpop.f32.mrf.mxu0
      %v900 = vadd.f32 0.0, %v899
      %901 = vmatmul.f32.gmra.mxu0 %v604
      %v902 = vpop.f32.mrf.mxu0
      %v903 = vadd.f32 0.0, %v902
      %904 = vmatmul.f32.gmra.mxu0 %v607
      %v905 = vpop.f32.mrf.mxu0
      %v906 = vadd.f32 0.0, %v905
      %907 = vdwg.mxu0
      %908 = vmatpush.msra.mxu0 0.0
      %909 = vmatpush.msra.mxu0 0.0
      %910 = vmatpush.msra.mxu0 0.0
      %911 = vmatpush.msra.mxu0 0.0
      %912 = vmatpush.msra.mxu0 0.0
      %913 = vmatpush.msra.mxu0 0.0
      %914 = vmatpush.msra.mxu0 0.0
      %915 = vmatpush.msra.mxu0 0.0
      %916 = vmatpush.msra.mxu0 0.0
      %917 = vmatpush.msra.mxu0 0.0
      %918 = vmatpush.msra.mxu0 0.0
      %919 = vmatpush.msra.mxu0 0.0
      %920 = vmatpush.msra.mxu0 0.0
      %921 = vmatpush.msra.mxu0 0.0
      %922 = vmatpush.msra.mxu0 %v870
      %923 = vmatpush.msra.mxu0 %v869
      %924 = vmatmul.f32.gmra.mxu0 %v645
      %v925 = vpop.f32.mrf.mxu0
      %v926 = vadd.f32 %v891, %v925
      %927 = vmatmul.f32.gmra.mxu0 %v648
      %v928 = vpop.f32.mrf.mxu0
      %v929 = vadd.f32 %v894, %v928
      %930 = vmatmul.f32.gmra.mxu0 %v651
      %v931 = vpop.f32.mrf.mxu0
      %v932 = vadd.f32 %v897, %v931
      %933 = vmatmul.f32.gmra.mxu0 %v654
      %v934 = vpop.f32.mrf.mxu0
      %v935 = vadd.f32 %v900, %v934
      %936 = vmatmul.f32.gmra.mxu0 %v657
      %v937 = vpop.f32.mrf.mxu0
      %v938 = vadd.f32 %v903, %v937
      %939 = vmatmul.f32.gmra.mxu0 %v660
      %v940 = vpop.f32.mrf.mxu0
      %v941 = vadd.f32 %v906, %v940
      %942 = vdwg.mxu0
      %943 = vmatpush.msra.mxu0 0.0
      %944 = vmatpush.msra.mxu0 0.0
      %945 = vmatpush.msra.mxu0 0.0
      %946 = vmatpush.msra.mxu0 0.0
      %947 = vmatpush.msra.mxu0 0.0
      %948 = vmatpush.msra.mxu0 0.0
      %949 = vmatpush.msra.mxu0 0.0
      %950 = vmatpush.msra.mxu0 0.0
      %951 = vmatpush.msra.mxu0 0.0
      %952 = vmatpush.msra.mxu0 0.0
      %953 = vmatpush.msra.mxu0 0.0
      %954 = vmatpush.msra.mxu0 0.0
      %955 = vmatpush.msra.mxu0 0.0
      %956 = vmatpush.msra.mxu0 0.0
      %957 = vmatpush.msra.mxu0 %v872
      %958 = vmatpush.msra.mxu0 %v871
      %959 = vmatmul.f32.gmra.mxu0 %v645
      %v960 = vpop.f32.mrf.mxu0
      %v961 = vadd.f32 0.0, %v960
      %962 = vmatmul.f32.gmra.mxu0 %v648
      %v963 = vpop.f32.mrf.mxu0
      %v964 = vadd.f32 0.0, %v963
      %965 = vmatmul.f32.gmra.mxu0 %v651
      %v966 = vpop.f32.mrf.mxu0
      %v967 = vadd.f32 0.0, %v966
      %968 = vmatmul.f32.gmra.mxu0 %v654
      %v969 = vpop.f32.mrf.mxu0
      %v970 = vadd.f32 0.0, %v969
      %971 = vmatmul.f32.gmra.mxu0 %v657
      %v972 = vpop.f32.mrf.mxu0
      %v973 = vadd.f32 0.0, %v972
      %974 = vmatmul.f32.gmra.mxu0 %v660
      %v975 = vpop.f32.mrf.mxu0
      %v976 = vadd.f32 0.0, %v975
      %977 = vdwg.mxu0
      %v978 = vadd.f32 %v926, %v961
      %v979 = vadd.f32 %v929, %v964
      %v980 = vadd.f32 %v932, %v967
      %v981 = vadd.f32 %v935, %v970
      %v982 = vadd.f32 %v938, %v973
      %v983 = vadd.f32 %v941, %v976
      %vm984 = vcmp.ge.f32.partialorder %v978, 0.0
      %vm985 = vcmp.ge.f32.partialorder %v979, 0.0
      %vm986 = vcmp.ge.f32.partialorder %v980, 0.0
      %vm987 = vcmp.ge.f32.partialorder %v981, 0.0
      %vm988 = vcmp.ge.f32.partialorder %v982, 0.0
      %vm989 = vcmp.ge.f32.partialorder %v983, 0.0
      %v990 = vmul.f32 %v978, 0.2
      %v991 = vmul.f32 %v979, 0.2
      %v992 = vmul.f32 %v980, 0.2
      %v993 = vmul.f32 %v981, 0.2
      %v994 = vmul.f32 %v982, 0.2
      %v995 = vmul.f32 %v983, 0.2
      %v996 = vsel %vm984, %v978, %v990
      %v997 = vsel %vm985, %v979, %v991
      %v998 = vsel %vm986, %v980, %v992
      %v999 = vsel %vm987, %v981, %v993
      %v1000 = vsel %vm988, %v982, %v994
      %v1001 = vsel %vm989, %v983, %v995
      %v1002 = vpack.c.bf16 %v996, %v996
      %v1003 = vpack.c.bf16 %v997, %v997
      %v1004 = vpack.c.bf16 %v998, %v998
      %v1005 = vpack.c.bf16 %v999, %v999
      %v1006 = vpack.c.bf16 %v1000, %v1000
      %v1007 = vpack.c.bf16 %v1001, %v1001
      %v1008 = vunpack.c.l.bf16 %v1002
      %v1009 = vunpack.c.l.bf16 %v1003
      %v1010 = vunpack.c.l.bf16 %v1004
      %v1011 = vunpack.c.l.bf16 %v1005
      %v1012 = vunpack.c.l.bf16 %v1006
      %v1013 = vunpack.c.l.bf16 %v1007
      %v1014 = vsub.f32 %v996, %v1008
      %v1015 = vsub.f32 %v997, %v1009
      %v1016 = vsub.f32 %v998, %v1010
      %v1017 = vsub.f32 %v999, %v1011
      %v1018 = vsub.f32 %v1000, %v1012
      %v1019 = vsub.f32 %v1001, %v1013
      %v1021 = vsel %vm781, %v1013, 0
      %1023 = vmatpush.msra.mxu0 0.0
      %1024 = vmatpush.msra.mxu0 0.0
      %1025 = vmatpush.msra.mxu0 0.0
      %1026 = vmatpush.msra.mxu0 0.0
      %1027 = vmatpush.msra.mxu0 0.0
      %1028 = vmatpush.msra.mxu0 0.0
      %1029 = vmatpush.msra.mxu0 0.0
      %1030 = vmatpush.msra.mxu0 0.0
      %1031 = vmatpush.msra.mxu0 0.0
      %1032 = vmatpush.msra.mxu0 0.0
      %1033 = vmatpush.msra.mxu0 %v1021
      %1034 = vmatpush.msra.mxu0 %v1012
      %1035 = vmatpush.msra.mxu0 %v1011
      %1036 = vmatpush.msra.mxu0 %v1010
      %1037 = vmatpush.msra.mxu0 %v1009
      %1038 = vmatpush.msra.mxu0 %v1008
      %1039 = vmatmul.f32.gmra.mxu0 %v776
      %v1040 = vpop.f32.mrf.mxu0
      %v1041 = vadd.f32 0.0, %v1040
      %1042 = vmatmul.f32.gmra.mxu0 %v779
      %v1043 = vpop.f32.mrf.mxu0
      %v1044 = vadd.f32 0.0, %v1043
      %1045 = vdwg.mxu0
      %1046 = vmatpush.msra.mxu0 0.0
      %1047 = vmatpush.msra.mxu0 0.0
      %1048 = vmatpush.msra.mxu0 0.0
      %1049 = vmatpush.msra.mxu0 0.0
      %1050 = vmatpush.msra.mxu0 0.0
      %1051 = vmatpush.msra.mxu0 0.0
      %1052 = vmatpush.msra.mxu0 0.0
      %1053 = vmatpush.msra.mxu0 0.0
      %1054 = vmatpush.msra.mxu0 0.0
      %1055 = vmatpush.msra.mxu0 0.0
      %1056 = vmatpush.msra.mxu0 %v1021
      %1057 = vmatpush.msra.mxu0 %v1012
      %1058 = vmatpush.msra.mxu0 %v1011
      %1059 = vmatpush.msra.mxu0 %v1010
      %1060 = vmatpush.msra.mxu0 %v1009
      %1061 = vmatpush.msra.mxu0 %v1008
      %1062 = vmatmul.f32.gmra.mxu0 %v809
      %v1063 = vpop.f32.mrf.mxu0
      %v1064 = vadd.f32 %v1041, %v1063
      %1065 = vmatmul.f32.gmra.mxu0 %v812
      %v1066 = vpop.f32.mrf.mxu0
      %v1067 = vadd.f32 %v1044, %v1066
      %1068 = vdwg.mxu0
      %v1070 = vsel %vm781, %v1019, 0
      %1072 = vmatpush.msra.mxu0 0.0
      %1073 = vmatpush.msra.mxu0 0.0
      %1074 = vmatpush.msra.mxu0 0.0
      %1075 = vmatpush.msra.mxu0 0.0
      %1076 = vmatpush.msra.mxu0 0.0
      %1077 = vmatpush.msra.mxu0 0.0
      %1078 = vmatpush.msra.mxu0 0.0
      %1079 = vmatpush.msra.mxu0 0.0
      %1080 = vmatpush.msra.mxu0 0.0
      %1081 = vmatpush.msra.mxu0 0.0
      %1082 = vmatpush.msra.mxu0 %v1070
      %1083 = vmatpush.msra.mxu0 %v1018
      %1084 = vmatpush.msra.mxu0 %v1017
      %1085 = vmatpush.msra.mxu0 %v1016
      %1086 = vmatpush.msra.mxu0 %v1015
      %1087 = vmatpush.msra.mxu0 %v1014
      %1088 = vmatmul.f32.gmra.mxu0 %v809
      %v1089 = vpop.f32.mrf.mxu0
      %v1090 = vadd.f32 0.0, %v1089
      %1091 = vmatmul.f32.gmra.mxu0 %v812
      %v1092 = vpop.f32.mrf.mxu0
      %v1093 = vadd.f32 0.0, %v1092
      %1094 = vdwg.mxu0
      %v1095 = vadd.f32 %v1064, %v1090
      %v1096 = vadd.f32 %v1067, %v1093
      %1097 = vst [vmem:[#allocation2 + $0x10] sm:$0xff] %v1095
      %1098 = vst [vmem:[#allocation2 + $0x18] sm:$0xff] %v1096
      %v1099 = vpack.c.bf16 %v549, %v549
      %v1100 = vpack.c.bf16 %v550, %v550
      %v1101 = vunpack.c.l.bf16 %v1099
      %v1102 = vunpack.c.l.bf16 %v1100
      %v1103 = vsub.f32 %v549, %v1101
      %v1104 = vsub.f32 %v550, %v1102
      %1105 = vmatpush.msra.mxu0 0.0
      %1106 = vmatpush.msra.mxu0 0.0
      %1107 = vmatpush.msra.mxu0 0.0
      %1108 = vmatpush.msra.mxu0 0.0
      %1109 = vmatpush.msra.mxu0 0.0
      %1110 = vmatpush.msra.mxu0 0.0
      %1111 = vmatpush.msra.mxu0 0.0
      %1112 = vmatpush.msra.mxu0 0.0
      %1113 = vmatpush.msra.mxu0 0.0
      %1114 = vmatpush.msra.mxu0 0.0
      %1115 = vmatpush.msra.mxu0 0.0
      %1116 = vmatpush.msra.mxu0 0.0
      %1117 = vmatpush.msra.mxu0 0.0
      %1118 = vmatpush.msra.mxu0 0.0
      %1119 = vmatpush.msra.mxu0 %v1102
      %1120 = vmatpush.msra.mxu0 %v1101
      %1121 = vmatmul.f32.gmra.mxu0 %v592
      %v1122 = vpop.f32.mrf.mxu0
      %v1123 = vadd.f32 0.0, %v1122
      %1124 = vmatmul.f32.gmra.mxu0 %v595
      %v1125 = vpop.f32.mrf.mxu0
      %v1126 = vadd.f32 0.0, %v1125
      %1127 = vmatmul.f32.gmra.mxu0 %v598
      %v1128 = vpop.f32.mrf.mxu0
      %v1129 = vadd.f32 0.0, %v1128
      %1130 = vmatmul.f32.gmra.mxu0 %v601
      %v1131 = vpop.f32.mrf.mxu0
      %v1132 = vadd.f32 0.0, %v1131
      %1133 = vmatmul.f32.gmra.mxu0 %v604
      %v1134 = vpop.f32.mrf.mxu0
      %v1135 = vadd.f32 0.0, %v1134
      %1136 = vmatmul.f32.gmra.mxu0 %v607
      %v1137 = vpop.f32.mrf.mxu0
      %v1138 = vadd.f32 0.0, %v1137
      %1139 = vdwg.mxu0
      %1140 = vmatpush.msra.mxu0 0.0
      %1141 = vmatpush.msra.mxu0 0.0
      %1142 = vmatpush.msra.mxu0 0.0
      %1143 = vmatpush.msra.mxu0 0.0
      %1144 = vmatpush.msra.mxu0 0.0
      %1145 = vmatpush.msra.mxu0 0.0
      %1146 = vmatpush.msra.mxu0 0.0
      %1147 = vmatpush.msra.mxu0 0.0
      %1148 = vmatpush.msra.mxu0 0.0
      %1149 = vmatpush.msra.mxu0 0.0
      %1150 = vmatpush.msra.mxu0 0.0
      %1151 = vmatpush.msra.mxu0 0.0
      %1152 = vmatpush.msra.mxu0 0.0
      %1153 = vmatpush.msra.mxu0 0.0
      %1154 = vmatpush.msra.mxu0 %v1102
      %1155 = vmatpush.msra.mxu0 %v1101
      %1156 = vmatmul.f32.gmra.mxu0 %v645
      %v1157 = vpop.f32.mrf.mxu0
      %v1158 = vadd.f32 %v1123, %v1157
      %1159 = vmatmul.f32.gmra.mxu0 %v648
      %v1160 = vpop.f32.mrf.mxu0
      %v1161 = vadd.f32 %v1126, %v1160
      %1162 = vmatmul.f32.gmra.mxu0 %v651
      %v1163 = vpop.f32.mrf.mxu0
      %v1164 = vadd.f32 %v1129, %v1163
      %1165 = vmatmul.f32.gmra.mxu0 %v654
      %v1166 = vpop.f32.mrf.mxu0
      %v1167 = vadd.f32 %v1132, %v1166
      %1168 = vmatmul.f32.gmra.mxu0 %v657
      %v1169 = vpop.f32.mrf.mxu0
      %v1170 = vadd.f32 %v1135, %v1169
      %1171 = vmatmul.f32.gmra.mxu0 %v660
      %v1172 = vpop.f32.mrf.mxu0
      %v1173 = vadd.f32 %v1138, %v1172
      %1174 = vdwg.mxu0
      %1175 = vmatpush.msra.mxu0 0.0
      %1176 = vmatpush.msra.mxu0 0.0
      %1177 = vmatpush.msra.mxu0 0.0
      %1178 = vmatpush.msra.mxu0 0.0
      %1179 = vmatpush.msra.mxu0 0.0
      %1180 = vmatpush.msra.mxu0 0.0
      %1181 = vmatpush.msra.mxu0 0.0
      %1182 = vmatpush.msra.mxu0 0.0
      %1183 = vmatpush.msra.mxu0 0.0
      %1184 = vmatpush.msra.mxu0 0.0
      %1185 = vmatpush.msra.mxu0 0.0
      %1186 = vmatpush.msra.mxu0 0.0
      %1187 = vmatpush.msra.mxu0 0.0
      %1188 = vmatpush.msra.mxu0 0.0
      %1189 = vmatpush.msra.mxu0 %v1104
      %1190 = vmatpush.msra.mxu0 %v1103
      %1191 = vmatmul.f32.gmra.mxu0 %v645
      %v1192 = vpop.f32.mrf.mxu0
      %v1193 = vadd.f32 0.0, %v1192
      %1194 = vmatmul.f32.gmra.mxu0 %v648
      %v1195 = vpop.f32.mrf.mxu0
      %v1196 = vadd.f32 0.0, %v1195
      %1197 = vmatmul.f32.gmra.mxu0 %v651
      %v1198 = vpop.f32.mrf.mxu0
      %v1199 = vadd.f32 0.0, %v1198
      %1200 = vmatmul.f32.gmra.mxu0 %v654
      %v1201 = vpop.f32.mrf.mxu0
      %v1202 = vadd.f32 0.0, %v1201
      %1203 = vmatmul.f32.gmra.mxu0 %v657
      %v1204 = vpop.f32.mrf.mxu0
      %v1205 = vadd.f32 0.0, %v1204
      %1206 = vmatmul.f32.gmra.mxu0 %v660
      %v1207 = vpop.f32.mrf.mxu0
      %v1208 = vadd.f32 0.0, %v1207
      %1209 = vdwg.mxu0
      %v1210 = vadd.f32 %v1158, %v1193
      %v1211 = vadd.f32 %v1161, %v1196
      %v1212 = vadd.f32 %v1164, %v1199
      %v1213 = vadd.f32 %v1167, %v1202
      %v1214 = vadd.f32 %v1170, %v1205
      %v1215 = vadd.f32 %v1173, %v1208
      %vm1216 = vcmp.ge.f32.partialorder %v1210, 0.0
      %vm1217 = vcmp.ge.f32.partialorder %v1211, 0.0
      %vm1218 = vcmp.ge.f32.partialorder %v1212, 0.0
      %vm1219 = vcmp.ge.f32.partialorder %v1213, 0.0
      %vm1220 = vcmp.ge.f32.partialorder %v1214, 0.0
      %vm1221 = vcmp.ge.f32.partialorder %v1215, 0.0
      %v1222 = vmul.f32 %v1210, 0.2
      %v1223 = vmul.f32 %v1211, 0.2
      %v1224 = vmul.f32 %v1212, 0.2
      %v1225 = vmul.f32 %v1213, 0.2
      %v1226 = vmul.f32 %v1214, 0.2
      %v1227 = vmul.f32 %v1215, 0.2
      %v1228 = vsel %vm1216, %v1210, %v1222
      %v1229 = vsel %vm1217, %v1211, %v1223
      %v1230 = vsel %vm1218, %v1212, %v1224
      %v1231 = vsel %vm1219, %v1213, %v1225
      %v1232 = vsel %vm1220, %v1214, %v1226
      %v1233 = vsel %vm1221, %v1215, %v1227
      %v1234 = vpack.c.bf16 %v1228, %v1228
      %v1235 = vpack.c.bf16 %v1229, %v1229
      %v1236 = vpack.c.bf16 %v1230, %v1230
      %v1237 = vpack.c.bf16 %v1231, %v1231
      %v1238 = vpack.c.bf16 %v1232, %v1232
      %v1239 = vpack.c.bf16 %v1233, %v1233
      %v1240 = vunpack.c.l.bf16 %v1234
      %v1241 = vunpack.c.l.bf16 %v1235
      %v1242 = vunpack.c.l.bf16 %v1236
      %v1243 = vunpack.c.l.bf16 %v1237
      %v1244 = vunpack.c.l.bf16 %v1238
      %v1245 = vunpack.c.l.bf16 %v1239
      %v1246 = vsub.f32 %v1228, %v1240
      %v1247 = vsub.f32 %v1229, %v1241
      %v1248 = vsub.f32 %v1230, %v1242
      %v1249 = vsub.f32 %v1231, %v1243
      %v1250 = vsub.f32 %v1232, %v1244
      %v1251 = vsub.f32 %v1233, %v1245
      %v1253 = vsel %vm781, %v1245, 0
      %1255 = vmatpush.msra.mxu0 0.0
      %1256 = vmatpush.msra.mxu0 0.0
      %1257 = vmatpush.msra.mxu0 0.0
      %1258 = vmatpush.msra.mxu0 0.0
      %1259 = vmatpush.msra.mxu0 0.0
      %1260 = vmatpush.msra.mxu0 0.0
      %1261 = vmatpush.msra.mxu0 0.0
      %1262 = vmatpush.msra.mxu0 0.0
      %1263 = vmatpush.msra.mxu0 0.0
      %1264 = vmatpush.msra.mxu0 0.0
      %1265 = vmatpush.msra.mxu0 %v1253
      %1266 = vmatpush.msra.mxu0 %v1244
      %1267 = vmatpush.msra.mxu0 %v1243
      %1268 = vmatpush.msra.mxu0 %v1242
      %1269 = vmatpush.msra.mxu0 %v1241
      %1270 = vmatpush.msra.mxu0 %v1240
      %1271 = vmatmul.f32.gmra.mxu0 %v776
      %v1272 = vpop.f32.mrf.mxu0
      %v1273 = vadd.f32 0.0, %v1272
      %1274 = vmatmul.f32.gmra.mxu0 %v779
      %v1275 = vpop.f32.mrf.mxu0
      %v1276 = vadd.f32 0.0, %v1275
      %1277 = vdwg.mxu0
      %1278 = vmatpush.msra.mxu0 0.0
      %1279 = vmatpush.msra.mxu0 0.0
      %1280 = vmatpush.msra.mxu0 0.0
      %1281 = vmatpush.msra.mxu0 0.0
      %1282 = vmatpush.msra.mxu0 0.0
      %1283 = vmatpush.msra.mxu0 0.0
      %1284 = vmatpush.msra.mxu0 0.0
      %1285 = vmatpush.msra.mxu0 0.0
      %1286 = vmatpush.msra.mxu0 0.0
      %1287 = vmatpush.msra.mxu0 0.0
      %1288 = vmatpush.msra.mxu0 %v1253
      %1289 = vmatpush.msra.mxu0 %v1244
      %1290 = vmatpush.msra.mxu0 %v1243
      %1291 = vmatpush.msra.mxu0 %v1242
      %1292 = vmatpush.msra.mxu0 %v1241
      %1293 = vmatpush.msra.mxu0 %v1240
      %1294 = vmatmul.f32.gmra.mxu0 %v809
      %v1295 = vpop.f32.mrf.mxu0
      %v1296 = vadd.f32 %v1273, %v1295
      %1297 = vmatmul.f32.gmra.mxu0 %v812
      %v1298 = vpop.f32.mrf.mxu0
      %v1299 = vadd.f32 %v1276, %v1298
      %1300 = vdwg.mxu0
      %v1302 = vsel %vm781, %v1251, 0
      %1304 = vmatpush.msra.mxu0 0.0
      %1305 = vmatpush.msra.mxu0 0.0
      %1306 = vmatpush.msra.mxu0 0.0
      %1307 = vmatpush.msra.mxu0 0.0
      %1308 = vmatpush.msra.mxu0 0.0
      %1309 = vmatpush.msra.mxu0 0.0
      %1310 = vmatpush.msra.mxu0 0.0
      %1311 = vmatpush.msra.mxu0 0.0
      %1312 = vmatpush.msra.mxu0 0.0
      %1313 = vmatpush.msra.mxu0 0.0
      %1314 = vmatpush.msra.mxu0 %v1302
      %1315 = vmatpush.msra.mxu0 %v1250
      %1316 = vmatpush.msra.mxu0 %v1249
      %1317 = vmatpush.msra.mxu0 %v1248
      %1318 = vmatpush.msra.mxu0 %v1247
      %1319 = vmatpush.msra.mxu0 %v1246
      %1320 = vmatmul.f32.gmra.mxu0 %v809
      %v1321 = vpop.f32.mrf.mxu0
      %v1322 = vadd.f32 0.0, %v1321
      %1323 = vmatmul.f32.gmra.mxu0 %v812
      %v1324 = vpop.f32.mrf.mxu0
      %v1325 = vadd.f32 0.0, %v1324
      %1326 = vdwg.mxu0
      %v1327 = vadd.f32 %v1296, %v1322
      %v1328 = vadd.f32 %v1299, %v1325
      %1329 = vst [vmem:[#allocation2 + $0x20] sm:$0xff] %v1327
      %1330 = vst [vmem:[#allocation2 + $0x28] sm:$0xff] %v1328
      %v1331 = vpack.c.bf16 %v551, %v551
      %v1332 = vpack.c.bf16 %v552, %v552
      %v1333 = vunpack.c.l.bf16 %v1331
      %v1334 = vunpack.c.l.bf16 %v1332
      %v1335 = vsub.f32 %v551, %v1333
      %v1336 = vsub.f32 %v552, %v1334
      %1337 = vmatpush.msra.mxu0 0.0
      %1338 = vmatpush.msra.mxu0 0.0
      %1339 = vmatpush.msra.mxu0 0.0
      %1340 = vmatpush.msra.mxu0 0.0
      %1341 = vmatpush.msra.mxu0 0.0
      %1342 = vmatpush.msra.mxu0 0.0
      %1343 = vmatpush.msra.mxu0 0.0
      %1344 = vmatpush.msra.mxu0 0.0
      %1345 = vmatpush.msra.mxu0 0.0
      %1346 = vmatpush.msra.mxu0 0.0
      %1347 = vmatpush.msra.mxu0 0.0
      %1348 = vmatpush.msra.mxu0 0.0
      %1349 = vmatpush.msra.mxu0 0.0
      %1350 = vmatpush.msra.mxu0 0.0
      %1351 = vmatpush.msra.mxu0 %v1334
      %1352 = vmatpush.msra.mxu0 %v1333
      %1353 = vmatmul.f32.gmra.mxu0 %v592
      %v1354 = vpop.f32.mrf.mxu0
      %v1355 = vadd.f32 0.0, %v1354
      %1356 = vmatmul.f32.gmra.mxu0 %v595
      %v1357 = vpop.f32.mrf.mxu0
      %v1358 = vadd.f32 0.0, %v1357
      %1359 = vmatmul.f32.gmra.mxu0 %v598
      %v1360 = vpop.f32.mrf.mxu0
      %v1361 = vadd.f32 0.0, %v1360
      %1362 = vmatmul.f32.gmra.mxu0 %v601
      %v1363 = vpop.f32.mrf.mxu0
      %v1364 = vadd.f32 0.0, %v1363
      %1365 = vmatmul.f32.gmra.mxu0 %v604
      %v1366 = vpop.f32.mrf.mxu0
      %v1367 = vadd.f32 0.0, %v1366
      %1368 = vmatmul.f32.gmra.mxu0 %v607
      %v1369 = vpop.f32.mrf.mxu0
      %v1370 = vadd.f32 0.0, %v1369
      %1371 = vdwg.mxu0
      %1372 = vmatpush.msra.mxu0 0.0
      %1373 = vmatpush.msra.mxu0 0.0
      %1374 = vmatpush.msra.mxu0 0.0
      %1375 = vmatpush.msra.mxu0 0.0
      %1376 = vmatpush.msra.mxu0 0.0
      %1377 = vmatpush.msra.mxu0 0.0
      %1378 = vmatpush.msra.mxu0 0.0
      %1379 = vmatpush.msra.mxu0 0.0
      %1380 = vmatpush.msra.mxu0 0.0
      %1381 = vmatpush.msra.mxu0 0.0
      %1382 = vmatpush.msra.mxu0 0.0
      %1383 = vmatpush.msra.mxu0 0.0
      %1384 = vmatpush.msra.mxu0 0.0
      %1385 = vmatpush.msra.mxu0 0.0
      %1386 = vmatpush.msra.mxu0 %v1334
      %1387 = vmatpush.msra.mxu0 %v1333
      %1388 = vmatmul.f32.gmra.mxu0 %v645
      %v1389 = vpop.f32.mrf.mxu0
      %v1390 = vadd.f32 %v1355, %v1389
      %1391 = vmatmul.f32.gmra.mxu0 %v648
      %v1392 = vpop.f32.mrf.mxu0
      %v1393 = vadd.f32 %v1358, %v1392
      %1394 = vmatmul.f32.gmra.mxu0 %v651
      %v1395 = vpop.f32.mrf.mxu0
      %v1396 = vadd.f32 %v1361, %v1395
      %1397 = vmatmul.f32.gmra.mxu0 %v654
      %v1398 = vpop.f32.mrf.mxu0
      %v1399 = vadd.f32 %v1364, %v1398
      %1400 = vmatmul.f32.gmra.mxu0 %v657
      %v1401 = vpop.f32.mrf.mxu0
      %v1402 = vadd.f32 %v1367, %v1401
      %1403 = vmatmul.f32.gmra.mxu0 %v660
      %v1404 = vpop.f32.mrf.mxu0
      %v1405 = vadd.f32 %v1370, %v1404
      %1406 = vdwg.mxu0
      %1407 = vmatpush.msra.mxu0 0.0
      %1408 = vmatpush.msra.mxu0 0.0
      %1409 = vmatpush.msra.mxu0 0.0
      %1410 = vmatpush.msra.mxu0 0.0
      %1411 = vmatpush.msra.mxu0 0.0
      %1412 = vmatpush.msra.mxu0 0.0
      %1413 = vmatpush.msra.mxu0 0.0
      %1414 = vmatpush.msra.mxu0 0.0
      %1415 = vmatpush.msra.mxu0 0.0
      %1416 = vmatpush.msra.mxu0 0.0
      %1417 = vmatpush.msra.mxu0 0.0
      %1418 = vmatpush.msra.mxu0 0.0
      %1419 = vmatpush.msra.mxu0 0.0
      %1420 = vmatpush.msra.mxu0 0.0
      %1421 = vmatpush.msra.mxu0 %v1336
      %1422 = vmatpush.msra.mxu0 %v1335
      %1423 = vmatmul.f32.gmra.mxu0 %v645
      %v1424 = vpop.f32.mrf.mxu0
      %v1425 = vadd.f32 0.0, %v1424
      %1426 = vmatmul.f32.gmra.mxu0 %v648
      %v1427 = vpop.f32.mrf.mxu0
      %v1428 = vadd.f32 0.0, %v1427
      %1429 = vmatmul.f32.gmra.mxu0 %v651
      %v1430 = vpop.f32.mrf.mxu0
      %v1431 = vadd.f32 0.0, %v1430
      %1432 = vmatmul.f32.gmra.mxu0 %v654
      %v1433 = vpop.f32.mrf.mxu0
      %v1434 = vadd.f32 0.0, %v1433
      %1435 = vmatmul.f32.gmra.mxu0 %v657
      %v1436 = vpop.f32.mrf.mxu0
      %v1437 = vadd.f32 0.0, %v1436
      %1438 = vmatmul.f32.gmra.mxu0 %v660
      %v1439 = vpop.f32.mrf.mxu0
      %v1440 = vadd.f32 0.0, %v1439
      %1441 = vdwg.mxu0
      %v1442 = vadd.f32 %v1390, %v1425
      %v1443 = vadd.f32 %v1393, %v1428
      %v1444 = vadd.f32 %v1396, %v1431
      %v1445 = vadd.f32 %v1399, %v1434
      %v1446 = vadd.f32 %v1402, %v1437
      %v1447 = vadd.f32 %v1405, %v1440
      %vm1448 = vcmp.ge.f32.partialorder %v1442, 0.0
      %vm1449 = vcmp.ge.f32.partialorder %v1443, 0.0
      %vm1450 = vcmp.ge.f32.partialorder %v1444, 0.0
      %vm1451 = vcmp.ge.f32.partialorder %v1445, 0.0
      %vm1452 = vcmp.ge.f32.partialorder %v1446, 0.0
      %vm1453 = vcmp.ge.f32.partialorder %v1447, 0.0
      %v1454 = vmul.f32 %v1442, 0.2
      %v1455 = vmul.f32 %v1443, 0.2
      %v1456 = vmul.f32 %v1444, 0.2
      %v1457 = vmul.f32 %v1445, 0.2
      %v1458 = vmul.f32 %v1446, 0.2
      %v1459 = vmul.f32 %v1447, 0.2
      %v1460 = vsel %vm1448, %v1442, %v1454
      %v1461 = vsel %vm1449, %v1443, %v1455
      %v1462 = vsel %vm1450, %v1444, %v1456
      %v1463 = vsel %vm1451, %v1445, %v1457
      %v1464 = vsel %vm1452, %v1446, %v1458
      %v1465 = vsel %vm1453, %v1447, %v1459
      %v1466 = vpack.c.bf16 %v1460, %v1460
      %v1467 = vpack.c.bf16 %v1461, %v1461
      %v1468 = vpack.c.bf16 %v1462, %v1462
      %v1469 = vpack.c.bf16 %v1463, %v1463
      %v1470 = vpack.c.bf16 %v1464, %v1464
      %v1471 = vpack.c.bf16 %v1465, %v1465
      %v1472 = vunpack.c.l.bf16 %v1466
      %v1473 = vunpack.c.l.bf16 %v1467
      %v1474 = vunpack.c.l.bf16 %v1468
      %v1475 = vunpack.c.l.bf16 %v1469
      %v1476 = vunpack.c.l.bf16 %v1470
      %v1477 = vunpack.c.l.bf16 %v1471
      %v1478 = vsub.f32 %v1460, %v1472
      %v1479 = vsub.f32 %v1461, %v1473
      %v1480 = vsub.f32 %v1462, %v1474
      %v1481 = vsub.f32 %v1463, %v1475
      %v1482 = vsub.f32 %v1464, %v1476
      %v1483 = vsub.f32 %v1465, %v1477
      %v1485 = vsel %vm781, %v1477, 0
      %1487 = vmatpush.msra.mxu0 0.0
      %1488 = vmatpush.msra.mxu0 0.0
      %1489 = vmatpush.msra.mxu0 0.0
      %1490 = vmatpush.msra.mxu0 0.0
      %1491 = vmatpush.msra.mxu0 0.0
      %1492 = vmatpush.msra.mxu0 0.0
      %1493 = vmatpush.msra.mxu0 0.0
      %1494 = vmatpush.msra.mxu0 0.0
      %1495 = vmatpush.msra.mxu0 0.0
      %1496 = vmatpush.msra.mxu0 0.0
      %1497 = vmatpush.msra.mxu0 %v1485
      %1498 = vmatpush.msra.mxu0 %v1476
      %1499 = vmatpush.msra.mxu0 %v1475
      %1500 = vmatpush.msra.mxu0 %v1474
      %1501 = vmatpush.msra.mxu0 %v1473
      %1502 = vmatpush.msra.mxu0 %v1472
      %1503 = vmatmul.f32.gmra.mxu0 %v776
      %v1504 = vpop.f32.mrf.mxu0
      %v1505 = vadd.f32 0.0, %v1504
      %1506 = vmatmul.f32.gmra.mxu0 %v779
      %v1507 = vpop.f32.mrf.mxu0
      %v1508 = vadd.f32 0.0, %v1507
      %1509 = vdwg.mxu0
      %1510 = vmatpush.msra.mxu0 0.0
      %1511 = vmatpush.msra.mxu0 0.0
      %1512 = vmatpush.msra.mxu0 0.0
      %1513 = vmatpush.msra.mxu0 0.0
      %1514 = vmatpush.msra.mxu0 0.0
      %1515 = vmatpush.msra.mxu0 0.0
      %1516 = vmatpush.msra.mxu0 0.0
      %1517 = vmatpush.msra.mxu0 0.0
      %1518 = vmatpush.msra.mxu0 0.0
      %1519 = vmatpush.msra.mxu0 0.0
      %1520 = vmatpush.msra.mxu0 %v1485
      %1521 = vmatpush.msra.mxu0 %v1476
      %1522 = vmatpush.msra.mxu0 %v1475
      %1523 = vmatpush.msra.mxu0 %v1474
      %1524 = vmatpush.msra.mxu0 %v1473
      %1525 = vmatpush.msra.mxu0 %v1472
      %1526 = vmatmul.f32.gmra.mxu0 %v809
      %v1527 = vpop.f32.mrf.mxu0
      %v1528 = vadd.f32 %v1505, %v1527
      %1529 = vmatmul.f32.gmra.mxu0 %v812
      %v1530 = vpop.f32.mrf.mxu0
      %v1531 = vadd.f32 %v1508, %v1530
      %1532 = vdwg.mxu0
      %v1534 = vsel %vm781, %v1483, 0
      %1536 = vmatpush.msra.mxu0 0.0
      %1537 = vmatpush.msra.mxu0 0.0
      %1538 = vmatpush.msra.mxu0 0.0
      %1539 = vmatpush.msra.mxu0 0.0
      %1540 = vmatpush.msra.mxu0 0.0
      %1541 = vmatpush.msra.mxu0 0.0
      %1542 = vmatpush.msra.mxu0 0.0
      %1543 = vmatpush.msra.mxu0 0.0
      %1544 = vmatpush.msra.mxu0 0.0
      %1545 = vmatpush.msra.mxu0 0.0
      %1546 = vmatpush.msra.mxu0 %v1534
      %1547 = vmatpush.msra.mxu0 %v1482
      %1548 = vmatpush.msra.mxu0 %v1481
      %1549 = vmatpush.msra.mxu0 %v1480
      %1550 = vmatpush.msra.mxu0 %v1479
      %1551 = vmatpush.msra.mxu0 %v1478
      %1552 = vmatmul.f32.gmra.mxu0 %v809
      %v1553 = vpop.f32.mrf.mxu0
      %v1554 = vadd.f32 0.0, %v1553
      %1555 = vmatmul.f32.gmra.mxu0 %v812
      %v1556 = vpop.f32.mrf.mxu0
      %v1557 = vadd.f32 0.0, %v1556
      %1558 = vdwg.mxu0
      %v1559 = vadd.f32 %v1528, %v1554
      %v1560 = vadd.f32 %v1531, %v1557
      %1561 = vst [vmem:[#allocation2 + $0x30] sm:$0xff] %v1559
      %1562 = vst [vmem:[#allocation2 + $0x38] sm:$0xff] %v1560
      %v1563 = vld [vmem:[#allocation2] sm:$0xff]
      %v1564 = vld [vmem:[#allocation2 + $0x8] sm:$0xff]
      %v1565 = vld [vmem:[#allocation2 + $0x10] sm:$0xff]
      %v1566 = vld [vmem:[#allocation2 + $0x18] sm:$0xff]
      %v1567 = vld [vmem:[#allocation2 + $0x20] sm:$0xff]
      %v1568 = vld [vmem:[#allocation2 + $0x28] sm:$0xff]
      %v1569 = vld [vmem:[#allocation2 + $0x30] sm:$0xff]
      %v1570 = vld [vmem:[#allocation2 + $0x38] sm:$0xff]
      %v1571 = vld [vmem:[%s5] sm:$0xff]
      %v1572 = vld [vmem:[%s5 + $0x8] sm:$0xff]
      %v1573 = vld [vmem:[%s5 + $0x10] sm:$0xff]
      %v1574 = vld [vmem:[%s5 + $0x18] sm:$0xff]
      %v1575 = vld [vmem:[%s5 + $0x20] sm:$0xff]
      %v1576 = vld [vmem:[%s5 + $0x28] sm:$0xff]
      %v1577 = vld [vmem:[%s5 + $0x30] sm:$0xff]
      %v1578 = vld [vmem:[%s5 + $0x38] sm:$0xff]
      %v1579 = vld [vmem:[%s5 + $0x40] sm:$0xff]
      %v1580 = vld [vmem:[%s5 + $0x48] sm:$0xff]
      %v1581 = vld [vmem:[%s5 + $0x50] sm:$0xff]
      %v1582 = vld [vmem:[%s5 + $0x58] sm:$0xff]
      %v1583 = vld [vmem:[%s5 + $0x60] sm:$0xff]
      %v1584 = vld [vmem:[%s5 + $0x68] sm:$0xff]
      %v1585 = vld [vmem:[%s5 + $0x70] sm:$0xff]
      %v1586 = vld [vmem:[%s5 + $0x78] sm:$0xff]
      %v1587 = vpack.c.bf16 %v1563, %v1563
      %v1588 = vpack.c.bf16 %v1564, %v1564
      %v1589 = vpack.c.bf16 %v1565, %v1565
      %v1590 = vpack.c.bf16 %v1566, %v1566
      %v1591 = vpack.c.bf16 %v1567, %v1567
      %v1592 = vpack.c.bf16 %v1568, %v1568
      %v1593 = vpack.c.bf16 %v1569, %v1569
      %v1594 = vpack.c.bf16 %v1570, %v1570
      %v1595 = vunpack.c.l.bf16 %v1587
      %v1596 = vunpack.c.l.bf16 %v1588
      %v1597 = vunpack.c.l.bf16 %v1589
      %v1598 = vunpack.c.l.bf16 %v1590
      %v1599 = vunpack.c.l.bf16 %v1591
      %v1600 = vunpack.c.l.bf16 %v1592
      %v1601 = vunpack.c.l.bf16 %v1593
      %v1602 = vunpack.c.l.bf16 %v1594
      %v1603 = vsub.f32 %v1563, %v1595
      %v1604 = vsub.f32 %v1564, %v1596
      %v1605 = vsub.f32 %v1565, %v1597
      %v1606 = vsub.f32 %v1566, %v1598
      %v1607 = vsub.f32 %v1567, %v1599
      %v1608 = vsub.f32 %v1568, %v1600
      %v1609 = vsub.f32 %v1569, %v1601
      %v1610 = vsub.f32 %v1570, %v1602
      %v1611 = vpack.c.bf16 %v1571, %v1571
      %v1612 = vpack.c.bf16 %v1572, %v1572
      %v1613 = vpack.c.bf16 %v1573, %v1573
      %v1614 = vpack.c.bf16 %v1574, %v1574
      %v1615 = vpack.c.bf16 %v1575, %v1575
      %v1616 = vpack.c.bf16 %v1576, %v1576
      %v1617 = vpack.c.bf16 %v1577, %v1577
      %v1618 = vpack.c.bf16 %v1578, %v1578
      %v1619 = vpack.c.bf16 %v1579, %v1579
      %v1620 = vpack.c.bf16 %v1580, %v1580
      %v1621 = vpack.c.bf16 %v1581, %v1581
      %v1622 = vpack.c.bf16 %v1582, %v1582
      %v1623 = vpack.c.bf16 %v1583, %v1583
      %v1624 = vpack.c.bf16 %v1584, %v1584
      %v1625 = vpack.c.bf16 %v1585, %v1585
      %v1626 = vpack.c.bf16 %v1586, %v1586
      %v1627 = vunpack.c.l.bf16 %v1611
      %v1628 = vunpack.c.l.bf16 %v1612
      %v1629 = vunpack.c.l.bf16 %v1613
      %v1630 = vunpack.c.l.bf16 %v1614
      %v1631 = vunpack.c.l.bf16 %v1615
      %v1632 = vunpack.c.l.bf16 %v1616
      %v1633 = vunpack.c.l.bf16 %v1617
      %v1634 = vunpack.c.l.bf16 %v1618
      %v1635 = vunpack.c.l.bf16 %v1619
      %v1636 = vunpack.c.l.bf16 %v1620
      %v1637 = vunpack.c.l.bf16 %v1621
      %v1638 = vunpack.c.l.bf16 %v1622
      %v1639 = vunpack.c.l.bf16 %v1623
      %v1640 = vunpack.c.l.bf16 %v1624
      %v1641 = vunpack.c.l.bf16 %v1625
      %v1642 = vunpack.c.l.bf16 %v1626
      %v1643 = vsub.f32 %v1571, %v1627
      %v1644 = vsub.f32 %v1572, %v1628
      %v1645 = vsub.f32 %v1573, %v1629
      %v1646 = vsub.f32 %v1574, %v1630
      %v1647 = vsub.f32 %v1575, %v1631
      %v1648 = vsub.f32 %v1576, %v1632
      %v1649 = vsub.f32 %v1577, %v1633
      %v1650 = vsub.f32 %v1578, %v1634
      %v1651 = vsub.f32 %v1579, %v1635
      %v1652 = vsub.f32 %v1580, %v1636
      %v1653 = vsub.f32 %v1581, %v1637
      %v1654 = vsub.f32 %v1582, %v1638
      %v1655 = vsub.f32 %v1583, %v1639
      %v1656 = vsub.f32 %v1584, %v1640
      %v1657 = vsub.f32 %v1585, %v1641
      %v1658 = vsub.f32 %v1586, %v1642
      %1659 = vmatpush.msra.mxu0 %v1642
      %1660 = vmatpush.msra.mxu0 %v1641
      %1661 = vmatpush.msra.mxu0 %v1640
      %1662 = vmatpush.msra.mxu0 %v1639
      %1663 = vmatpush.msra.mxu0 %v1638
      %1664 = vmatpush.msra.mxu0 %v1637
      %1665 = vmatpush.msra.mxu0 %v1636
      %1666 = vmatpush.msra.mxu0 %v1635
      %1667 = vmatpush.msra.mxu0 %v1634
      %1668 = vmatpush.msra.mxu0 %v1633
      %1669 = vmatpush.msra.mxu0 %v1632
      %1670 = vmatpush.msra.mxu0 %v1631
      %1671 = vmatpush.msra.mxu0 %v1630
      %1672 = vmatpush.msra.mxu0 %v1629
      %1673 = vmatpush.msra.mxu0 %v1628
      %1674 = vmatpush.msra.mxu0 %v1627
      %1675 = vmatmul.f32.gmra.mxu0 %v1603
      %v1676 = vpop.f32.mrf.mxu0
      %v1677 = vadd.f32 0.0, %v1676
      %1678 = vmatmul.f32.gmra.mxu0 %v1604
      %v1679 = vpop.f32.mrf.mxu0
      %v1680 = vadd.f32 0.0, %v1679
      %1681 = vmatmul.f32.gmra.mxu0 %v1605
      %v1682 = vpop.f32.mrf.mxu0
      %v1683 = vadd.f32 0.0, %v1682
      %1684 = vmatmul.f32.gmra.mxu0 %v1606
      %v1685 = vpop.f32.mrf.mxu0
      %v1686 = vadd.f32 0.0, %v1685
      %1687 = vmatmul.f32.gmra.mxu0 %v1607
      %v1688 = vpop.f32.mrf.mxu0
      %v1689 = vadd.f32 0.0, %v1688
      %1690 = vmatmul.f32.gmra.mxu0 %v1608
      %v1691 = vpop.f32.mrf.mxu0
      %v1692 = vadd.f32 0.0, %v1691
      %1693 = vmatmul.f32.gmra.mxu0 %v1609
      %v1694 = vpop.f32.mrf.mxu0
      %v1695 = vadd.f32 0.0, %v1694
      %1696 = vmatmul.f32.gmra.mxu0 %v1610
      %v1697 = vpop.f32.mrf.mxu0
      %v1698 = vadd.f32 0.0, %v1697
      %1699 = vdwg.mxu0
      %1700 = vmatpush.msra.mxu0 %v1642
      %1701 = vmatpush.msra.mxu0 %v1641
      %1702 = vmatpush.msra.mxu0 %v1640
      %1703 = vmatpush.msra.mxu0 %v1639
      %1704 = vmatpush.msra.mxu0 %v1638
      %1705 = vmatpush.msra.mxu0 %v1637
      %1706 = vmatpush.msra.mxu0 %v1636
      %1707 = vmatpush.msra.mxu0 %v1635
      %1708 = vmatpush.msra.mxu0 %v1634
      %1709 = vmatpush.msra.mxu0 %v1633
      %1710 = vmatpush.msra.mxu0 %v1632
      %1711 = vmatpush.msra.mxu0 %v1631
      %1712 = vmatpush.msra.mxu0 %v1630
      %1713 = vmatpush.msra.mxu0 %v1629
      %1714 = vmatpush.msra.mxu0 %v1628
      %1715 = vmatpush.msra.mxu0 %v1627
      %1716 = vmatmul.f32.gmra.mxu0 %v1595
      %v1717 = vpop.f32.mrf.mxu0
      %v1718 = vadd.f32 %v1677, %v1717
      %1719 = vmatmul.f32.gmra.mxu0 %v1596
      %v1720 = vpop.f32.mrf.mxu0
      %v1721 = vadd.f32 %v1680, %v1720
      %1722 = vmatmul.f32.gmra.mxu0 %v1597
      %v1723 = vpop.f32.mrf.mxu0
      %v1724 = vadd.f32 %v1683, %v1723
      %1725 = vmatmul.f32.gmra.mxu0 %v1598
      %v1726 = vpop.f32.mrf.mxu0
      %v1727 = vadd.f32 %v1686, %v1726
      %1728 = vmatmul.f32.gmra.mxu0 %v1599
      %v1729 = vpop.f32.mrf.mxu0
      %v1730 = vadd.f32 %v1689, %v1729
      %1731 = vmatmul.f32.gmra.mxu0 %v1600
      %v1732 = vpop.f32.mrf.mxu0
      %v1733 = vadd.f32 %v1692, %v1732
      %1734 = vmatmul.f32.gmra.mxu0 %v1601
      %v1735 = vpop.f32.mrf.mxu0
      %v1736 = vadd.f32 %v1695, %v1735
      %1737 = vmatmul.f32.gmra.mxu0 %v1602
      %v1738 = vpop.f32.mrf.mxu0
      %v1739 = vadd.f32 %v1698, %v1738
      %1740 = vdwg.mxu0
      %1741 = vmatpush.msra.mxu0 %v1658
      %1742 = vmatpush.msra.mxu0 %v1657
      %1743 = vmatpush.msra.mxu0 %v1656
      %1744 = vmatpush.msra.mxu0 %v1655
      %1745 = vmatpush.msra.mxu0 %v1654
      %1746 = vmatpush.msra.mxu0 %v1653
      %1747 = vmatpush.msra.mxu0 %v1652
      %1748 = vmatpush.msra.mxu0 %v1651
      %1749 = vmatpush.msra.mxu0 %v1650
      %1750 = vmatpush.msra.mxu0 %v1649
      %1751 = vmatpush.msra.mxu0 %v1648
      %1752 = vmatpush.msra.mxu0 %v1647
      %1753 = vmatpush.msra.mxu0 %v1646
      %1754 = vmatpush.msra.mxu0 %v1645
      %1755 = vmatpush.msra.mxu0 %v1644
      %1756 = vmatpush.msra.mxu0 %v1643
      %1757 = vmatmul.f32.gmra.mxu0 %v1595
      %v1758 = vpop.f32.mrf.mxu0
      %v1759 = vadd.f32 0.0, %v1758
      %1760 = vmatmul.f32.gmra.mxu0 %v1596
      %v1761 = vpop.f32.mrf.mxu0
      %v1762 = vadd.f32 0.0, %v1761
      %1763 = vmatmul.f32.gmra.mxu0 %v1597
      %v1764 = vpop.f32.mrf.mxu0
      %v1765 = vadd.f32 0.0, %v1764
      %1766 = vmatmul.f32.gmra.mxu0 %v1598
      %v1767 = vpop.f32.mrf.mxu0
      %v1768 = vadd.f32 0.0, %v1767
      %1769 = vmatmul.f32.gmra.mxu0 %v1599
      %v1770 = vpop.f32.mrf.mxu0
      %v1771 = vadd.f32 0.0, %v1770
      %1772 = vmatmul.f32.gmra.mxu0 %v1600
      %v1773 = vpop.f32.mrf.mxu0
      %v1774 = vadd.f32 0.0, %v1773
      %1775 = vmatmul.f32.gmra.mxu0 %v1601
      %v1776 = vpop.f32.mrf.mxu0
      %v1777 = vadd.f32 0.0, %v1776
      %1778 = vmatmul.f32.gmra.mxu0 %v1602
      %v1779 = vpop.f32.mrf.mxu0
      %v1780 = vadd.f32 0.0, %v1779
      %1781 = vdwg.mxu0
      %v1782 = vadd.f32 %v1718, %v1759
      %v1783 = vadd.f32 %v1721, %v1762
      %v1784 = vadd.f32 %v1724, %v1765
      %v1785 = vadd.f32 %v1727, %v1768
      %v1786 = vadd.f32 %v1730, %v1771
      %v1787 = vadd.f32 %v1733, %v1774
      %v1788 = vadd.f32 %v1736, %v1777
      %v1789 = vadd.f32 %v1739, %v1780
      %1790 = vst.msk [vmem:[%s275] sm:$0xff] %vm373, %v1782
      %1791 = vst.msk [vmem:[%s275 + $0x8] sm:$0xff] %vm373, %v1783
      %1792 = vst.msk [vmem:[%s275 + $0x10] sm:$0xff] %vm373, %v1784
      %1793 = vst.msk [vmem:[%s275 + $0x18] sm:$0xff] %vm373, %v1785
      %1794 = vst.msk [vmem:[%s275 + $0x20] sm:$0xff] %vm373, %v1786
      %1795 = vst.msk [vmem:[%s275 + $0x28] sm:$0xff] %vm373, %v1787
      %1796 = vst.msk [vmem:[%s275 + $0x30] sm:$0xff] %vm373, %v1788
      %1797 = vst.msk [vmem:[%s275 + $0x38] sm:$0xff] %vm373, %v1789
      %s1798 = smul.u32 8, %s17
      %p1799 = scmp.lt.s32.totalorder %s1798, 15
      %s1800 = scalar_select %p1799, %s1798, 15
      %s1801 = smul.addr %s1800, 8
      %s1802 = scalar_lea.vmem %s6, %s1801
      // Predicated region
      $region45: #{tpu_custom_call.1} parent=43 // pred_check
        %p1803 = pneg %p171
      $region46: #{tpu_custom_call.1} parent=43 // pred_check_branch
        %1805 = sbr.rel (%p1803) target = $region48
      $region47: #{tpu_custom_call.1} parent=43 // pred_region
        %s1806 = smul.u32 8, %s17
      $region48: #{tpu_custom_call.1} parent=43 // pred_fallthru
        _
    $region44: #{tpu_custom_call.1} parent=5 // pred_fallthru
      _
    %p1807 = scmp.le.s32.totalorder 2, %s12
    // Predicated region
    $region49: #{tpu_custom_call.1} parent=5 // pred_check
      %p1808 = pneg %p1807
    $region50: #{tpu_custom_call.1} parent=5 // pred_check_branch
      %1810 = sbr.rel (%p1808) target = $region52
    $region51: #{tpu_custom_call.1} parent=5 // pred_region
      %s1811 = ssub.s32 %s12, 2
      // Predicated region
      $region53: #{tpu_custom_call.1} parent=51 // pred_check
        %p1812 = pneg %p177
      $region54: #{tpu_custom_call.1} parent=51 // pred_check_branch
        %1814 = sbr.rel (%p1812) target = $region56
      $region55: #{tpu_custom_call.1} parent=51 // pred_region
        %s1815 = smul.u32 8, %s18
        %p1816 = scmp.lt.s32.totalorder %s1815, 15
        %s1817 = scalar_select %p1816, %s1815, 15
        %s1818 = smul.addr %s1817, 8
        %s1819 = scalar_lea.vmem %s6, %s1818
      $region56: #{tpu_custom_call.1} parent=51 // pred_fallthru
        _
    $region52: #{tpu_custom_call.1} parent=5 // pred_fallthru
      _
  $region6: #{tpu_custom_call.1} parent=0 // loop_footer
    %s16 = sadd.s32 1, %s12
  $region7: #{tpu_custom_call.1} parent=0 // loop_footer_branch
    %11 = sbr.rel target = $region3
  $region8: #{tpu_custom_call.1} parent=0 // loop_exit
    _

</llo_original>
